<compile_context>
chip_gen: v6e
topology: v6e:2x2x1
jax: 0.10.0
libtpu: 0.0.40
codegen_flags: <defaults>
</compile_context>

<pallas_src>
import numpy as np

import jax
import jax.numpy as jnp
from jax import lax
from jax.experimental import pallas as pl
from jax.experimental.pallas import tpu as pltpu

_TAPS = tuple((kh, kw) for kh in range(3) for kw in range(3))


# ---------------------------------------------------------------------------
# Small helpers
# ---------------------------------------------------------------------------
def _nbytes(shape, dtype):
    n = 1
    for d in shape:
        n *= int(d)
    return n * np.dtype(dtype).itemsize


def _compiler_params(vmem_bytes):
    # Scoped-VMEM limit sized from the actual per-step footprint (x3 for
    # double buffering + headroom), clamped to what every generation grants.
    limit = int(min(max(3 * vmem_bytes, 4 * 1024 * 1024), 64 * 1024 * 1024))
    return pltpu.CompilerParams(dimension_semantics=("parallel",),
                                vmem_limit_bytes=limit)


def _pack_weight(w):
    """(Cout, Cin, 3, 3) -> (9*Cin, Cout) bf16, row index = (kh*3+kw)*Cin + ci."""
    cout, cin = int(w.shape[0]), int(w.shape[1])
    return jnp.transpose(w, (2, 3, 1, 0)).reshape(9 * cin, cout).astype(jnp.bfloat16)


def _affine_from_stats(stats, gamma, beta, count, eps):
    """Finish train-mode BatchNorm from per-sample (sum, sum_sq) partials."""
    s = jnp.sum(stats[:, 0, :], axis=0)
    ss = jnp.sum(stats[:, 1, :], axis=0)
    mean = s / count
    var = jnp.maximum(ss / count - mean * mean, 0.0)        # biased variance
    scale = gamma * lax.rsqrt(var + eps)
    shift = beta - mean * scale
    return (scale.reshape(1, -1).astype(jnp.float32),
            shift.reshape(1, -1).astype(jnp.float32))


# ---------------------------------------------------------------------------
# Kernels (one batch element per grid step)
# ---------------------------------------------------------------------------
def _make_conv1_kernel(H, W, Cin, Cout):
    L = H * W

    def kernel(xp_ref, w_ref, y_ref, st_ref, col_ref):
        # Build the im2col patch matrix once, then ONE MXU matmul (K = 9*Cin),
        # bf16 operands with f32 accumulation.
        for t, (kh, kw) in enumerate(_TAPS):
            patch = xp_ref[0, kh:kh + H, kw:kw + W, :]            # (H, W, Cin)
            col_ref[:, t * Cin:(t + 1) * Cin] = patch.reshape(L, Cin)
        y = jnp.dot(col_ref[...].astype(jnp.bfloat16), w_ref[...],
                    preferred_element_type=jnp.float32)           # (L, Cout) f32
        y_ref[0] = y.reshape(H, W, Cout)
        # Per-sample partial sums for train-mode BatchNorm (finalized outside).
        st_ref[0, 0:1, :] = jnp.sum(y, axis=0, keepdims=True)
        st_ref[0, 1:2, :] = jnp.sum(y * y, axis=0, keepdims=True)

    return kernel


def _make_conv2_kernel(H, W, Cout):
    L = H * W

    def kernel(y1_ref, sc_ref, sh_ref, w_ref, y_ref, st_ref, pad_ref, col_ref):
        # BatchNorm1 (precomputed scale/shift) or conv1 bias, then ReLU.
        a = jnp.maximum(y1_ref[0].reshape(L, Cout) * sc_ref[...] + sh_ref[...], 0.0)
        a3 = a.reshape(H, W, Cout)

        # Reflect pad (pad=1), built from values: top/bottom rows via a concat
        # along the untiled leading axis, then interior + two 1-wide column
        # stores, all sourced from `rows` (no read-after-write on pad_ref).
        rows = jnp.concatenate([a3[1:2], a3, a3[H - 2:H - 1]], axis=0)  # (H+2, W, C)
        pad_ref[:, 1:W + 1, :] = rows
        pad_ref[:, 0:1, :] = rows[:, 1:2, :]
        pad_ref[:, W + 1:W + 2, :] = rows[:, W - 2:W - 1, :]

        # im2col + one MXU matmul (K = 9*Cout), bf16 operands, f32 accumulation.
        for t, (kh, kw) in enumerate(_TAPS):
            patch = pad_ref[kh:kh + H, kw:kw + W, :]
            col_ref[:, t * Cout:(t + 1) * Cout] = patch.reshape(L, Cout)
        y = jnp.dot(col_ref[...].astype(jnp.bfloat16), w_ref[...],
                    preferred_element_type=jnp.float32)           # (L, Cout) f32
        y_ref[0] = y.reshape(H, W, Cout)
        st_ref[0, 0:1, :] = jnp.sum(y, axis=0, keepdims=True)
        st_ref[0, 1:2, :] = jnp.sum(y * y, axis=0, keepdims=True)

    return kernel


def _make_finalize_kernel(H, W, Cout, should_pool):
    L = H * W
    HO, WO = H // 2, W // 2

    def kernel(y2_ref, sc_ref, sh_ref, *out_refs):
        if should_pool:
            pool_ref, full_ref = out_refs
        else:
            (full_ref,) = out_refs
        y = jnp.maximum(y2_ref[0].reshape(L, Cout) * sc_ref[...] + sh_ref[...], 0.0)
        y3 = y.reshape(H, W, Cout)
        full_ref[0] = y3
        if should_pool:
            # 2x2 stride-2 max-pool, bit-exact on the VPU (no selection
            # matmuls).  Vertical pairs via a leading-dim split; horizontal
            # pairs via a static unroll over output columns; each write is a
            # full (HO, C) slab into a (WO, HO, C)-ordered output block (the
            # wrapper transposes it back for free).
            y4 = y3.reshape(HO, 2, W, Cout)
            rmax = jnp.maximum(y4[:, 0], y4[:, 1])                 # (HO, W, C)
            for wo in range(WO):
                pool_ref[0, wo] = jnp.maximum(rmax[:, 2 * wo, :],
                                              rmax[:, 2 * wo + 1, :])

    return kernel


# ---------------------------------------------------------------------------
# Wrapper: NCHW <-> NHWC glue, weight packing, BN finalization between passes
# ---------------------------------------------------------------------------
def downconv_forward(x_nchw, params, *, should_pool, should_batch_norm, eps=1e-5):
    N, Cin, H, W = (int(d) for d in x_nchw.shape)
    Cout = int(params["w1"].shape[0])
    L = H * W
    if should_pool:
        assert H % 2 == 0 and W % 2 == 0, "MaxPool2d(2,2) expects even H, W"
    HO, WO = (H // 2, W // 2) if should_pool else (H, W)
    f32 = jnp.float32
    bf16 = jnp.bfloat16

    # NCHW -> NHWC and reflect-pad of the network input (wrapper-side, free).
    x = jnp.transpose(x_nchw, (0, 2, 3, 1)).astype(f32)
    xp = jnp.pad(x, ((0, 0), (1, 1), (1, 1), (0, 0)), mode="reflect")
    w1p = _pack_weight(params["w1"])              # (9*Cin,  Cout) bf16
    w2p = _pack_weight(params["w2"])              # (9*Cout, Cout) bf16

    count = N * H * W

    # ---- pass A: conv1 -> y1_raw + per-sample BN partial sums ---------------
    vmem_a = (_nbytes((1, H + 2, W + 2, Cin), f32)
              + _nbytes((9 * Cin, Cout), bf16)
              + _nbytes((1, H, W, Cout), f32)
              + _nbytes((1, 2, Cout), f32)
              + _nbytes((L, 9 * Cin), f32))
    y1_raw, stats1 = pl.pallas_call(
        _make_conv1_kernel(H, W, Cin, Cout),
        grid=(N,),
        in_specs=[
            pl.BlockSpec((1, H + 2, W + 2, Cin), lambda n: (n, 0, 0, 0)),
            pl.BlockSpec((9 * Cin, Cout), lambda n: (0, 0)),
        ],
        out_specs=[
            pl.BlockSpec((1, H, W, Cout), lambda n: (n, 0, 0, 0)),
            pl.BlockSpec((1, 2, Cout), lambda n: (n, 0, 0)),
        ],
        out_shape=(jax.ShapeDtypeStruct((N, H, W, Cout), f32),
                   jax.ShapeDtypeStruct((N, 2, Cout), f32)),
        scratch_shapes=[pltpu.VMEM((L, 9 * Cin), f32)],
        compiler_params=_compiler_params(vmem_a),
        cost_estimate=pl.CostEstimate(
            flops=2 * N * L * 9 * Cin * Cout,
            transcendentals=0,
            bytes_accessed=N * (_nbytes((H + 2, W + 2, Cin), f32)
                                + _nbytes((H, W, Cout), f32))),
    )(xp, w1p)

    if should_batch_norm:
        sc1, sh1 = _affine_from_stats(stats1, params["gamma1"], params["beta1"],
                                      count, eps)
    else:
        sc1 = jnp.ones((1, Cout), f32)
        sh1 = params["bias1"].reshape(1, Cout).astype(f32)

    # ---- pass B: bn1/bias + relu + reflect-pad + conv2 ----------------------
    vmem_b = (2 * _nbytes((1, H, W, Cout), f32)
              + 2 * _nbytes((1, Cout), f32)
              + _nbytes((9 * Cout, Cout), bf16)
              + _nbytes((1, 2, Cout), f32)
              + _nbytes((H + 2, W + 2, Cout), f32)
              + _nbytes((L, 9 * Cout), f32))
    y2_raw, stats2 = pl.pallas_call(
        _make_conv2_kernel(H, W, Cout),
        grid=(N,),
        in_specs=[
            pl.BlockSpec((1, H, W, Cout), lambda n: (n, 0, 0, 0)),
            pl.BlockSpec((1, Cout), lambda n: (0, 0)),
            pl.BlockSpec((1, Cout), lambda n: (0, 0)),
            pl.BlockSpec((9 * Cout, Cout), lambda n: (0, 0)),
        ],
        out_specs=[
            pl.BlockSpec((1, H, W, Cout), lambda n: (n, 0, 0, 0)),
            pl.BlockSpec((1, 2, Cout), lambda n: (n, 0, 0)),
        ],
        out_shape=(jax.ShapeDtypeStruct((N, H, W, Cout), f32),
                   jax.ShapeDtypeStruct((N, 2, Cout), f32)),
        scratch_shapes=[pltpu.VMEM((H + 2, W + 2, Cout), f32),
                        pltpu.VMEM((L, 9 * Cout), f32)],
        compiler_params=_compiler_params(vmem_b),
        cost_estimate=pl.CostEstimate(
            flops=2 * N * L * 9 * Cout * Cout + 4 * N * L * Cout,
            transcendentals=0,
            bytes_accessed=2 * N * _nbytes((H, W, Cout), f32)),
    )(y1_raw, sc1, sh1, w2p)

    if should_batch_norm:
        sc2, sh2 = _affine_from_stats(stats2, params["gamma2"], params["beta2"],
                                      count, eps)
    else:
        sc2 = jnp.ones((1, Cout), f32)
        sh2 = params["bias2"].reshape(1, Cout).astype(f32)

    # ---- pass C: bn2/bias + relu (-> full) + 2x2 max-pool (-> pooled) -------
    if should_pool:
        out_shape = (jax.ShapeDtypeStruct((N, WO, HO, Cout), f32),  # (wo, ho) order
                     jax.ShapeDtypeStruct((N, H, W, Cout), f32))
        out_specs = [pl.BlockSpec((1, WO, HO, Cout), lambda n: (n, 0, 0, 0)),
                     pl.BlockSpec((1, H, W, Cout), lambda n: (n, 0, 0, 0))]
    else:
        out_shape = jax.ShapeDtypeStruct((N, H, W, Cout), f32)
        out_specs = pl.BlockSpec((1, H, W, Cout), lambda n: (n, 0, 0, 0))
    vmem_c = (2 * _nbytes((1, H, W, Cout), f32)
              + _nbytes((1, HO, WO, Cout), f32)
              + 2 * _nbytes((1, Cout), f32))
    outs = pl.pallas_call(
        _make_finalize_kernel(H, W, Cout, should_pool),
        grid=(N,),
        in_specs=[
            pl.BlockSpec((1, H, W, Cout), lambda n: (n, 0, 0, 0)),
            pl.BlockSpec((1, Cout), lambda n: (0, 0)),
            pl.BlockSpec((1, Cout), lambda n: (0, 0)),
        ],
        out_specs=out_specs,
        out_shape=out_shape,
        compiler_params=_compiler_params(vmem_c),
        cost_estimate=pl.CostEstimate(
            flops=6 * N * L * Cout,
            transcendentals=0,
            bytes_accessed=3 * N * _nbytes((H, W, Cout), f32)),
    )(y2_raw, sc2, sh2)

    if should_pool:
        pooled_woh, full_nhwc = outs
        pooled_nhwc = jnp.transpose(pooled_woh, (0, 2, 1, 3))     # -> (N, HO, WO, C)
    else:
        full_nhwc = outs
        pooled_nhwc = full_nhwc

    pooled = jnp.transpose(pooled_nhwc, (0, 3, 1, 2))
    full = jnp.transpose(full_nhwc, (0, 3, 1, 2))
    return pooled, full


# ---------------------------------------------------------------------------
# Pure-JAX reference (mirrors the PyTorch forward) for the correctness check.
# ---------------------------------------------------------------------------
def ref_forward(x, params, should_pool, should_batch_norm, eps=1e-5):
    def conv(x, w, bias):
        xp = jnp.pad(x, ((0, 0), (0, 0), (1, 1), (1, 1)), mode="reflect")
        y = lax.conv_general_dilated(
            xp, w, (1, 1), "VALID",
            dimension_numbers=("NCHW", "OIHW", "NCHW"),
            precision=lax.Precision.HIGHEST)
        if bias is not None:
            y = y + bias[None, :, None, None]
        return y

    def bn(y, g, b):
        mean = jnp.mean(y, axis=(0, 2, 3), keepdims=True)
        var = jnp.mean((y - mean) ** 2, axis=(0, 2, 3), keepdims=True)
        return ((y - mean) / jnp.sqrt(var + eps)) * g[None, :, None, None] \
            + b[None, :, None, None]

    if should_batch_norm:
        y = jax.nn.relu(bn(conv(x, params["w1"], None),
                           params["gamma1"], params["beta1"]))
        y = jax.nn.relu(bn(conv(y, params["w2"], None),
                           params["gamma2"], params["beta2"]))
    else:
        y = jax.nn.relu(conv(x, params["w1"], params["bias1"]))
        y = jax.nn.relu(conv(y, params["w2"], params["bias2"]))
    full = y
    if should_pool:
        y = lax.reduce_window(y, -jnp.inf, lax.max,
                              (1, 1, 2, 2), (1, 1, 2, 2), "VALID")
    return y, full


if __name__ == "__main__":
    N, Cin, Cout, H, W = 2, 4, 8, 16, 16
    should_pool, should_batch_norm = True, True

    key = jax.random.PRNGKey(0)
    kx, kw1, kw2 = jax.random.split(key, 3)
    x = jax.random.normal(kx, (N, Cin, H, W), jnp.float32)

    # Deterministic synthetic parameters (shapes per nn.Conv2d / nn.BatchNorm2d).
    params = {
        "w1": jax.random.normal(kw1, (Cout, Cin, 3, 3), jnp.float32)
              * (1.0 / (Cin * 9)) ** 0.5,
        "w2": jax.random.normal(kw2, (Cout, Cout, 3, 3), jnp.float32)
              * (1.0 / (Cout * 9)) ** 0.5,
    }
    if should_batch_norm:
        params["gamma1"] = 1.0 + 0.1 * jnp.arange(Cout, dtype=jnp.float32)
        params["beta1"] = 0.05 * jnp.arange(Cout, dtype=jnp.float32)
        params["gamma2"] = 1.0 - 0.05 * jnp.arange(Cout, dtype=jnp.float32)
        params["beta2"] = -0.02 * jnp.arange(Cout, dtype=jnp.float32)
    else:
        params["bias1"] = 0.01 * jnp.arange(Cout, dtype=jnp.float32)
        params["bias2"] = -0.01 * jnp.arange(Cout, dtype=jnp.float32)

    pooled, full = downconv_forward(
        x, params, should_pool=should_pool, should_batch_norm=should_batch_norm)
    jax.block_until_ready((pooled, full))

    ref_pooled, ref_full = ref_forward(x, params, should_pool, should_batch_norm)
    assert pooled.shape == ref_pooled.shape, (pooled.shape, ref_pooled.shape)
    assert full.shape == ref_full.shape, (full.shape, ref_full.shape)
    # Conv matmuls use bf16 operands with f32 accumulation -> loose tolerance.
    assert bool(jnp.allclose(full, ref_full, atol=5e-2, rtol=5e-2)), \
        "full_size mismatch"
    assert bool(jnp.allclose(pooled, ref_pooled, atol=5e-2, rtol=5e-2)), \
        "pooled mismatch"
    print("KERNEL_OK")
</pallas_src>

<mosaic_0001>
module attributes {stable_mosaic.version = 11 : i64} {
  func.func @kernel(%arg0: i32, %arg1: memref<1x18x18x4xf32, #tpu.memory_space<vmem>>, %arg2: memref<36x8xbf16, #tpu.memory_space<vmem>>, %arg3: memref<1x16x16x8xf32, #tpu.memory_space<vmem>>, %arg4: memref<1x2x8xf32, #tpu.memory_space<vmem>>, %arg5: memref<256x36xf32, #tpu.memory_space<vmem>>) attributes {dimension_semantics = [#tpu.dimension_semantics<parallel>], iteration_bounds = array<i64: 2>, scalar_prefetch = 0 : i64, scratch_operands = 1 : i64, tpu.core_type = #tpu.core_type<tc>, window_params = [{transform_indices = @transform_0, window_bounds = array<i64: 1, 18, 18, 4>}, {pipeline_mode = #tpu.pipeline_mode<synchronous>, transform_indices = @transform_1, window_bounds = array<i64: 36, 8>}, {transform_indices = @transform_2, window_bounds = array<i64: 1, 16, 16, 8>}, {transform_indices = @transform_3, window_bounds = array<i64: 1, 2, 8>}]} {
    %c0 = arith.constant 0 : index
    %c0_0 = arith.constant 0 : index
    %c0_1 = arith.constant 0 : index
    %c0_2 = arith.constant 0 : index
    %0 = vector.load %arg1[%c0, %c0_0, %c0_1, %c0_2] : memref<1x18x18x4xf32, #tpu.memory_space<vmem>>, vector<1x16x16x4xf32>
    %1 = vector.shape_cast %0 : vector<1x16x16x4xf32> to vector<16x16x4xf32>
    %2 = vector.shape_cast %1 : vector<16x16x4xf32> to vector<256x4xf32>
    %c0_3 = arith.constant 0 : index
    %c0_4 = arith.constant 0 : index
    %3 = vector.load %arg5[%c0_3, %c0_4] : memref<256x36xf32, #tpu.memory_space<vmem>>, vector<256x4xf32>
    tpu.vector_store %arg5[%c0_3, %c0_4], %2 {strides = array<i32>} : memref<256x36xf32, #tpu.memory_space<vmem>>, vector<256x4xf32>,
    %c0_5 = arith.constant 0 : index
    %c0_6 = arith.constant 0 : index
    %c1 = arith.constant 1 : index
    %c0_7 = arith.constant 0 : index
    %4 = vector.load %arg1[%c0_5, %c0_6, %c1, %c0_7] : memref<1x18x18x4xf32, #tpu.memory_space<vmem>>, vector<1x16x16x4xf32>
    %5 = vector.shape_cast %4 : vector<1x16x16x4xf32> to vector<16x16x4xf32>
    %6 = vector.shape_cast %5 : vector<16x16x4xf32> to vector<256x4xf32>
    %c0_8 = arith.constant 0 : index
    %c4 = arith.constant 4 : index
    %7 = vector.load %arg5[%c0_8, %c4] : memref<256x36xf32, #tpu.memory_space<vmem>>, vector<256x4xf32>
    tpu.vector_store %arg5[%c0_8, %c4], %6 {strides = array<i32>} : memref<256x36xf32, #tpu.memory_space<vmem>>, vector<256x4xf32>,
    %c0_9 = arith.constant 0 : index
    %c0_10 = arith.constant 0 : index
    %c2 = arith.constant 2 : index
    %c0_11 = arith.constant 0 : index
    %8 = vector.load %arg1[%c0_9, %c0_10, %c2, %c0_11] : memref<1x18x18x4xf32, #tpu.memory_space<vmem>>, vector<1x16x16x4xf32>
    %9 = vector.shape_cast %8 : vector<1x16x16x4xf32> to vector<16x16x4xf32>
    %10 = vector.shape_cast %9 : vector<16x16x4xf32> to vector<256x4xf32>
    %c0_12 = arith.constant 0 : index
    %c8 = arith.constant 8 : index
    %11 = vector.load %arg5[%c0_12, %c8] : memref<256x36xf32, #tpu.memory_space<vmem>>, vector<256x4xf32>
    tpu.vector_store %arg5[%c0_12, %c8], %10 {strides = array<i32>} : memref<256x36xf32, #tpu.memory_space<vmem>>, vector<256x4xf32>,
    %c0_13 = arith.constant 0 : index
    %c1_14 = arith.constant 1 : index
    %c0_15 = arith.constant 0 : index
    %c0_16 = arith.constant 0 : index
    %12 = vector.load %arg1[%c0_13, %c1_14, %c0_15, %c0_16] : memref<1x18x18x4xf32, #tpu.memory_space<vmem>>, vector<1x16x16x4xf32>
    %13 = vector.shape_cast %12 : vector<1x16x16x4xf32> to vector<16x16x4xf32>
    %14 = vector.shape_cast %13 : vector<16x16x4xf32> to vector<256x4xf32>
    %c0_17 = arith.constant 0 : index
    %c12 = arith.constant 12 : index
    %15 = vector.load %arg5[%c0_17, %c12] : memref<256x36xf32, #tpu.memory_space<vmem>>, vector<256x4xf32>
    tpu.vector_store %arg5[%c0_17, %c12], %14 {strides = array<i32>} : memref<256x36xf32, #tpu.memory_space<vmem>>, vector<256x4xf32>,
    %c0_18 = arith.constant 0 : index
    %c1_19 = arith.constant 1 : index
    %c1_20 = arith.constant 1 : index
    %c0_21 = arith.constant 0 : index
    %16 = vector.load %arg1[%c0_18, %c1_19, %c1_20, %c0_21] : memref<1x18x18x4xf32, #tpu.memory_space<vmem>>, vector<1x16x16x4xf32>
    %17 = vector.shape_cast %16 : vector<1x16x16x4xf32> to vector<16x16x4xf32>
    %18 = vector.shape_cast %17 : vector<16x16x4xf32> to vector<256x4xf32>
    %c0_22 = arith.constant 0 : index
    %c16 = arith.constant 16 : index
    %19 = vector.load %arg5[%c0_22, %c16] : memref<256x36xf32, #tpu.memory_space<vmem>>, vector<256x4xf32>
    tpu.vector_store %arg5[%c0_22, %c16], %18 {strides = array<i32>} : memref<256x36xf32, #tpu.memory_space<vmem>>, vector<256x4xf32>,
    %c0_23 = arith.constant 0 : index
    %c1_24 = arith.constant 1 : index
    %c2_25 = arith.constant 2 : index
    %c0_26 = arith.constant 0 : index
    %20 = vector.load %arg1[%c0_23, %c1_24, %c2_25, %c0_26] : memref<1x18x18x4xf32, #tpu.memory_space<vmem>>, vector<1x16x16x4xf32>
    %21 = vector.shape_cast %20 : vector<1x16x16x4xf32> to vector<16x16x4xf32>
    %22 = vector.shape_cast %21 : vector<16x16x4xf32> to vector<256x4xf32>
    %c0_27 = arith.constant 0 : index
    %c20 = arith.constant 20 : index
    %23 = vector.load %arg5[%c0_27, %c20] : memref<256x36xf32, #tpu.memory_space<vmem>>, vector<256x4xf32>
    tpu.vector_store %arg5[%c0_27, %c20], %22 {strides = array<i32>} : memref<256x36xf32, #tpu.memory_space<vmem>>, vector<256x4xf32>,
    %c0_28 = arith.constant 0 : index
    %c2_29 = arith.constant 2 : index
    %c0_30 = arith.constant 0 : index
    %c0_31 = arith.constant 0 : index
    %24 = vector.load %arg1[%c0_28, %c2_29, %c0_30, %c0_31] : memref<1x18x18x4xf32, #tpu.memory_space<vmem>>, vector<1x16x16x4xf32>
    %25 = vector.shape_cast %24 : vector<1x16x16x4xf32> to vector<16x16x4xf32>
    %26 = vector.shape_cast %25 : vector<16x16x4xf32> to vector<256x4xf32>
    %c0_32 = arith.constant 0 : index
    %c24 = arith.constant 24 : index
    %27 = vector.load %arg5[%c0_32, %c24] : memref<256x36xf32, #tpu.memory_space<vmem>>, vector<256x4xf32>
    tpu.vector_store %arg5[%c0_32, %c24], %26 {strides = array<i32>} : memref<256x36xf32, #tpu.memory_space<vmem>>, vector<256x4xf32>,
    %c0_33 = arith.constant 0 : index
    %c2_34 = arith.constant 2 : index
    %c1_35 = arith.constant 1 : index
    %c0_36 = arith.constant 0 : index
    %28 = vector.load %arg1[%c0_33, %c2_34, %c1_35, %c0_36] : memref<1x18x18x4xf32, #tpu.memory_space<vmem>>, vector<1x16x16x4xf32>
    %29 = vector.shape_cast %28 : vector<1x16x16x4xf32> to vector<16x16x4xf32>
    %30 = vector.shape_cast %29 : vector<16x16x4xf32> to vector<256x4xf32>
    %c0_37 = arith.constant 0 : index
    %c28 = arith.constant 28 : index
    %31 = vector.load %arg5[%c0_37, %c28] : memref<256x36xf32, #tpu.memory_space<vmem>>, vector<256x4xf32>
    tpu.vector_store %arg5[%c0_37, %c28], %30 {strides = array<i32>} : memref<256x36xf32, #tpu.memory_space<vmem>>, vector<256x4xf32>,
    %c0_38 = arith.constant 0 : index
    %c2_39 = arith.constant 2 : index
    %c2_40 = arith.constant 2 : index
    %c0_41 = arith.constant 0 : index
    %32 = vector.load %arg1[%c0_38, %c2_39, %c2_40, %c0_41] : memref<1x18x18x4xf32, #tpu.memory_space<vmem>>, vector<1x16x16x4xf32>
    %33 = vector.shape_cast %32 : vector<1x16x16x4xf32> to vector<16x16x4xf32>
    %34 = vector.shape_cast %33 : vector<16x16x4xf32> to vector<256x4xf32>
    %c0_42 = arith.constant 0 : index
    %c32 = arith.constant 32 : index
    %35 = vector.load %arg5[%c0_42, %c32] : memref<256x36xf32, #tpu.memory_space<vmem>>, vector<256x4xf32>
    tpu.vector_store %arg5[%c0_42, %c32], %34 {strides = array<i32>} : memref<256x36xf32, #tpu.memory_space<vmem>>, vector<256x4xf32>,
    %c0_43 = arith.constant 0 : index
    %c0_44 = arith.constant 0 : index
    %36 = vector.load %arg5[%c0_43, %c0_44] : memref<256x36xf32, #tpu.memory_space<vmem>>, vector<256x36xf32>
    %37 = arith.truncf %36 : vector<256x36xf32> to vector<256x36xbf16>
    %c0_45 = arith.constant 0 : index
    %c0_46 = arith.constant 0 : index
    %38 = vector.load %arg2[%c0_45, %c0_46] : memref<36x8xbf16, #tpu.memory_space<vmem>>, vector<36x8xbf16>
    %cst = arith.constant dense<0.000000e+00> : vector<256x8xf32>
    %39 = tpu.matmul %37, %38, %cst {dimension_numbers = #tpu.dot_dimension_numbers<[1], [0], [0], [1], [0, 0, 1, 1], [], []>} : vector<256x36xbf16>, vector<36x8xbf16>, vector<256x8xf32> -> vector<256x8xf32>
    %40 = vector.shape_cast %39 : vector<256x8xf32> to vector<16x16x8xf32>
    %c0_47 = arith.constant 0 : index
    %c0_48 = arith.constant 0 : index
    %c0_49 = arith.constant 0 : index
    %c0_50 = arith.constant 0 : index
    %41 = vector.load %arg3[%c0_47, %c0_48, %c0_49, %c0_50] : memref<1x16x16x8xf32, #tpu.memory_space<vmem>>, vector<1x16x16x8xf32>
    %42 = vector.shape_cast %41 : vector<1x16x16x8xf32> to vector<16x16x8xf32>
    %43 = vector.shape_cast %40 : vector<16x16x8xf32> to vector<1x16x16x8xf32>
    tpu.vector_store %arg3[%c0_47, %c0_48, %c0_49, %c0_50], %43 {strides = array<i32>} : memref<1x16x16x8xf32, #tpu.memory_space<vmem>>, vector<1x16x16x8xf32>,
    %cst_51 = arith.constant dense<0.000000e+00> : vector<8xf32>
    %44 = vector.multi_reduction <add>, %39, %cst_51 [0] : vector<256x8xf32> to vector<8xf32>
    %45 = vector.shape_cast %44 : vector<8xf32> to vector<1x8xf32>
    %c0_52 = arith.constant 0 : index
    %c0_53 = arith.constant 0 : index
    %c0_54 = arith.constant 0 : index
    %46 = vector.load %arg4[%c0_52, %c0_53, %c0_54] : memref<1x2x8xf32, #tpu.memory_space<vmem>>, vector<1x1x8xf32>
    %47 = vector.shape_cast %46 : vector<1x1x8xf32> to vector<1x8xf32>
    %48 = vector.shape_cast %45 : vector<1x8xf32> to vector<1x1x8xf32>
    tpu.vector_store %arg4[%c0_52, %c0_53, %c0_54], %48 {strides = array<i32>} : memref<1x2x8xf32, #tpu.memory_space<vmem>>, vector<1x1x8xf32>,
    %49 = arith.mulf %39, %39 : vector<256x8xf32>
    %cst_55 = arith.constant dense<0.000000e+00> : vector<8xf32>
    %50 = vector.multi_reduction <add>, %49, %cst_55 [0] : vector<256x8xf32> to vector<8xf32>
    %51 = vector.shape_cast %50 : vector<8xf32> to vector<1x8xf32>
    %c0_56 = arith.constant 0 : index
    %c1_57 = arith.constant 1 : index
    %c0_58 = arith.constant 0 : index
    %52 = vector.load %arg4[%c0_56, %c1_57, %c0_58] : memref<1x2x8xf32, #tpu.memory_space<vmem>>, vector<1x1x8xf32>
    %53 = vector.shape_cast %52 : vector<1x1x8xf32> to vector<1x8xf32>
    %54 = vector.shape_cast %51 : vector<1x8xf32> to vector<1x1x8xf32>
    tpu.vector_store %arg4[%c0_56, %c1_57, %c0_58], %54 {strides = array<i32>} : memref<1x2x8xf32, #tpu.memory_space<vmem>>, vector<1x1x8xf32>,
    return
  }
  func.func @transform_0(%arg0: i32) -> (i32, i32, i32, i32) {
    %c0_i32 = arith.constant 0 : i32
    %c0_i32_0 = arith.constant 0 : i32
    %c0_i32_1 = arith.constant 0 : i32
    %c0_i32_2 = arith.constant 0 : i32
    return %arg0, %c0_i32, %c0_i32_0, %c0_i32_1 : i32, i32, i32, i32
  }
  func.func @transform_1(%arg0: i32) -> (i32, i32) {
    %c0_i32 = arith.constant 0 : i32
    %c0_i32_0 = arith.constant 0 : i32
    %c0_i32_1 = arith.constant 0 : i32
    return %c0_i32, %c0_i32_0 : i32, i32
  }
  func.func @transform_2(%arg0: i32) -> (i32, i32, i32, i32) {
    %c0_i32 = arith.constant 0 : i32
    %c0_i32_0 = arith.constant 0 : i32
    %c0_i32_1 = arith.constant 0 : i32
    %c0_i32_2 = arith.constant 0 : i32
    return %arg0, %c0_i32, %c0_i32_0, %c0_i32_1 : i32, i32, i32, i32
  }
  func.func @transform_3(%arg0: i32) -> (i32, i32, i32) {
    %c0_i32 = arith.constant 0 : i32
    %c0_i32_0 = arith.constant 0 : i32
    %c0_i32_1 = arith.constant 0 : i32
    return %arg0, %c0_i32, %c0_i32_0 : i32, i32, i32
  }
}

</mosaic_0001>

<llo_original>
// kernel: tpu_custom_call.1
$region0: #{tpu_custom_call.1}
  #allocation0 [shape = 'u32[]', space=smem, size = 0x4, offset = 0x4, fixed_abs, tag = 'smem constant byte address 0x4 - core index']
  #allocation1 [shape = 'u32[144,128]{1,0:T(1,128)}', space=vmem, size = 0x12000, scoped, tag = 'internal scratch']
  #allocation2 [shape = 'f32[256,36]{1,0:T(8,128)}', space=vmem, size = 0x20000, scoped, tag = 'scratch operand']
  %s0 = inlined_call_operand.vmem [shape: f32[2,18,18,4], index: 0, kind: input, shape index: {}]
  %s1 = inlined_call_operand.vmem [shape: bf16[36,8], index: 1, kind: input, shape index: {}]
  %s2 = inlined_call_operand.vmem [shape: f32[2,16,16,8], index: 2, kind: output, shape index: {0}]
  %s3 = inlined_call_operand.hbm [shape: f32[2,2,8], index: 3, kind: output, shape index: {1}]
  %4 = xla_tuple %s2, %s3
  %s5 = sld [smem:[#allocation0]]
  $region49: #{tpu_custom_call.1} parent=0
    _
  %s7 = ssub.s32 1, %s5
  %s8 = scalar_select 0, %s7, %s5
  $region1: #{tpu_custom_call.1} parent=0
    #allocation3 [shape = 'u8[2048]{0}', space=vmem, size = 0x800, scoped, tag = 'output window, operand 1']
    #allocation4 [shape = 's32[2]{0}', space=sflag, size = 0x8, scoped, tag = 'scoped memory for tpu_custom_call.1']
    %9 = vsyncpa [#allocation4], 0
    %s10 = scalar_lea.sflag [#allocation4], 1
    %11 = vsyncpa %s10, 0
    loop: start=0, step=1, limit=4
    $region2: #{tpu_custom_call.1} parent=1 // loop_pre_header
      _
    $region3: #{tpu_custom_call.1} parent=1 // loop_header
      %s13 = sphi 0, %s17
      %p14 = scmp.ge.s32.totalorder %s13, 4
      %s23 = sphi 0, %s25
      %s26 = sphi 0, %s23
      %s27 = sphi 0, %s26
      %s43 = sphi 0, %s27
      %s47 = sphi 0, %s47
      %s49 = sphi 0, %s47
      %s50 = sphi 0, %s49
      %s64 = sphi 0, %s50
      %s70 = sphi 0, %s72
      %s73 = sphi 0, %s70
      %s74 = sphi 0, %s73
      %s90 = sphi 0, %s74
      %s96 = sphi 0, %s98
      %s99 = sphi 0, %s96
      %s100 = sphi 0, %s99
      %s116 = sphi 0, %s100
    $region4: #{tpu_custom_call.1} parent=1 // loop_header_branch
      %16 = sbr.rel (%p14) target = $region8
    $region5: #{tpu_custom_call.1} parent=1 // loop_body
      %s18 = ssub.s32 %s13, 1
      %s19 = ssub.s32 %s13, 2
      %s20 = sadd.s32 %s13, 1
      %s21 = ssub.s32 %s13, %s20
      %p22 = scmp.eq.s32.totalorder %s21, 0
      %s24 = sadd.s32 %s23, 1
      %s25 = scalar_select %p22, %s23, %s24
      %p28 = pneg %p22
      %p29 = scmp.eq.s32.totalorder %s13, 1
      %p30 = por %p28, %p29
      %p31 = scmp.ne.s32.totalorder %s23, %s26
      %p32 = scmp.eq.s32.totalorder %s13, 0
      %p33 = por %p31, %p32
      %p34 = scmp.ne.s32.totalorder %s23, %s26
      %p35 = scmp.eq.s32.totalorder %s18, 1
      %p36 = por %p34, %p35
      %p37 = scmp.ne.s32.totalorder %s26, %s27
      %p38 = scmp.eq.s32.totalorder %s18, 0
      %p39 = por %p37, %p38
      %p40 = scmp.ne.s32.totalorder %s26, %s27
      %p41 = scmp.eq.s32.totalorder %s19, 1
      %p42 = por %p40, %p41
      %p44 = scmp.ne.s32.totalorder %s27, %s43
      %p45 = scmp.eq.s32.totalorder %s19, 0
      %p46 = por %p44, %p45
      %s48 = sadd.s32 %s47, 1
      %p51 = scmp.eq.s32.totalorder %s13, 1
      %p52 = scmp.ne.s32.totalorder %s47, %s49
      %p53 = scmp.eq.s32.totalorder %s13, 0
      %p54 = por %p52, %p53
      %p55 = scmp.ne.s32.totalorder %s47, %s49
      %p56 = scmp.eq.s32.totalorder %s18, 1
      %p57 = por %p55, %p56
      %p58 = scmp.ne.s32.totalorder %s49, %s50
      %p59 = scmp.eq.s32.totalorder %s18, 0
      %p60 = por %p58, %p59
      %p61 = scmp.ne.s32.totalorder %s49, %s50
      %p62 = scmp.eq.s32.totalorder %s19, 1
      %p63 = por %p61, %p62
      %p65 = scmp.ne.s32.totalorder %s50, %s64
      %p66 = scmp.eq.s32.totalorder %s19, 0
      %p67 = por %p65, %p66
      %s68 = ssub.s32 %s13, %s20
      %p69 = scmp.eq.s32.totalorder %s68, 0
      %s71 = sadd.s32 %s70, 1
      %s72 = scalar_select %p69, %s70, %s71
      %p75 = pneg %p69
      %p76 = scmp.eq.s32.totalorder %s13, 1
      %p77 = por %p75, %p76
      %p78 = scmp.ne.s32.totalorder %s70, %s73
      %p79 = scmp.eq.s32.totalorder %s13, 0
      %p80 = por %p78, %p79
      %p81 = scmp.ne.s32.totalorder %s70, %s73
      %p82 = scmp.eq.s32.totalorder %s18, 1
      %p83 = por %p81, %p82
      %p84 = scmp.ne.s32.totalorder %s73, %s74
      %p85 = scmp.eq.s32.totalorder %s18, 0
      %p86 = por %p84, %p85
      %p87 = scmp.ne.s32.totalorder %s73, %s74
      %p88 = scmp.eq.s32.totalorder %s19, 1
      %p89 = por %p87, %p88
      %p91 = scmp.ne.s32.totalorder %s74, %s90
      %p92 = scmp.eq.s32.totalorder %s19, 0
      %p93 = por %p91, %p92
      %s94 = ssub.s32 %s13, %s20
      %p95 = scmp.eq.s32.totalorder %s94, 0
      %s97 = sadd.s32 %s96, 1
      %s98 = scalar_select %p95, %s96, %s97
      %p101 = pneg %p95
      %p102 = scmp.eq.s32.totalorder %s13, 1
      %p103 = por %p101, %p102
      %p104 = scmp.ne.s32.totalorder %s96, %s99
      %p105 = scmp.eq.s32.totalorder %s13, 0
      %p106 = por %p104, %p105
      %p107 = scmp.ne.s32.totalorder %s96, %s99
      %p108 = scmp.eq.s32.totalorder %s18, 1
      %p109 = por %p107, %p108
      %p110 = scmp.ne.s32.totalorder %s99, %s100
      %p111 = scmp.eq.s32.totalorder %s18, 0
      %p112 = por %p110, %p111
      %p113 = scmp.ne.s32.totalorder %s99, %s100
      %p114 = scmp.eq.s32.totalorder %s19, 1
      %p115 = por %p113, %p114
      %p117 = scmp.ne.s32.totalorder %s100, %s116
      %p118 = scmp.eq.s32.totalorder %s19, 0
      %p119 = por %p117, %p118
      %p120 = scmp.le.s32.totalorder 1, %s13
      %p121 = scmp.lt.s32.totalorder %s13, 3
      %p122 = pnand %p120, %p121
      %p123 = pneg %p122
      // Predicated region
      $region9: #{tpu_custom_call.1} parent=5 // pred_check
        _
      $region10: #{tpu_custom_call.1} parent=5 // pred_check_branch
        %125 = sbr.rel (%p122) target = $region12
      $region11: #{tpu_custom_call.1} parent=5 // pred_region
        %s126 = ssub.s32 %s13, 1
        // Predicated region
        $region13: #{tpu_custom_call.1} parent=11 // pred_check
          %p127 = pneg %p60
        $region14: #{tpu_custom_call.1} parent=11 // pred_check_branch
          %129 = sbr.rel (%p127) target = $region16
        $region15: #{tpu_custom_call.1} parent=11 // pred_region
          _
        $region16: #{tpu_custom_call.1} parent=11 // pred_fallthru
          _
      $region12: #{tpu_custom_call.1} parent=5 // pred_fallthru
        _
      %p130 = scmp.lt.s32.totalorder %s13, 2
      // Predicated region
      $region17: #{tpu_custom_call.1} parent=5 // pred_check
        %p131 = pneg %p130
      $region18: #{tpu_custom_call.1} parent=5 // pred_check_branch
        %133 = sbr.rel (%p131) target = $region20
      $region19: #{tpu_custom_call.1} parent=5 // pred_region
        // Predicated region
        $region21: #{tpu_custom_call.1} parent=19 // pred_check
          %p134 = pneg %p33
        $region22: #{tpu_custom_call.1} parent=19 // pred_check_branch
          %136 = sbr.rel (%p134) target = $region24
        $region23: #{tpu_custom_call.1} parent=19 // pred_region
          %p137 = scmp.lt.s32.totalorder %s13, 1
          %s138 = scalar_select %p137, %s13, 1
          %s139 = smul.addr %s138, 54
          %s140 = smul.addr %s139, 8
          %s141 = scalar_lea.vmem %s0, %s140
        $region24: #{tpu_custom_call.1} parent=19 // pred_fallthru
          _
      $region20: #{tpu_custom_call.1} parent=5 // pred_fallthru
        _
      %p142 = scmp.le.s32.totalorder 1, %s13
      %p143 = scmp.lt.s32.totalorder %s13, 3
      %p144 = pnand %p142, %p143
      %p145 = pneg %p144
      // Predicated region
      $region25: #{tpu_custom_call.1} parent=5 // pred_check
        _
      $region26: #{tpu_custom_call.1} parent=5 // pred_check_branch
        %147 = sbr.rel (%p144) target = $region28
      $region27: #{tpu_custom_call.1} parent=5 // pred_region
        %s148 = ssub.s32 %s13, 1
        %p149 = scmp.lt.s32.totalorder %s18, 1
        %s150 = scalar_select %p149, %s18, 1
        %s151 = smul.addr %s150, 54
        %s152 = smul.addr %s151, 8
        %s153 = scalar_lea.vmem %s0, %s152
        %p154 = pneg %p39
        %p155 = pneg %p36
        %p156 = pneg %p60
        %p157 = pneg %p57
        %p158 = pneg %p86
        %p159 = pneg %p83
        %p160 = scmp.lt.s32.totalorder %s18, 1
        %s161 = scalar_select %p160, %s18, 1
        %s162 = smul.addr %s161, 32
        %s163 = smul.addr %s162, 8
        %s164 = scalar_lea.vmem %s2, %s163
        %p165 = pneg %p112
        %p166 = pneg %p109
        %s167 = sand.u32 %s99, 1
        %s168 = scalar_lea.sflag [#allocation4], %s167
        %s169 = sand.u32 %s99, 1
        %s170 = smul.addr %s169, 2
        %s171 = scalar_lea.vmem [#allocation3], %s170
        %p172 = scmp.lt.s32.totalorder %s18, 1
        %s173 = scalar_select %p172, %s18, 1
        %s174 = smul.addr %s173, 54
        %s175 = smul.addr %s174, 8
        %s176 = scalar_lea.vmem %s0, %s175
        %p177 = scmp.lt.s32.totalorder %s18, 1
        %s178 = scalar_select %p177, %s18, 1
        %s179 = smul.addr %s178, 32
        %s180 = smul.addr %s179, 8
        %s181 = scalar_lea.vmem %s2, %s180
        %v183 = vld [vmem:[%s176] sm:$0xff]
        %v184 = vld [vmem:[%s176 + $0x8] sm:$0xff]
        %v185 = vld [vmem:[%s176 + $0x18] sm:$0xff]
        %v186 = vld [vmem:[%s176 + $0x20] sm:$0xff]
        %v187 = vld [vmem:[%s176 + $0x30] sm:$0xff]
        %v188 = vld [vmem:[%s176 + $0x38] sm:$0xff]
        %v189 = vld [vmem:[%s176 + $0x48] sm:$0xff]
        %v190 = vld [vmem:[%s176 + $0x50] sm:$0xff]
        %v191 = vld [vmem:[%s176 + $0x60] sm:$0xff]
        %v192 = vld [vmem:[%s176 + $0x68] sm:$0xff]
        %v193 = vld [vmem:[%s176 + $0x78] sm:$0xff]
        %v194 = vld [vmem:[%s176 + $0x80] sm:$0xff]
        %v195 = vld [vmem:[%s176 + $0x90] sm:$0xff]
        %v196 = vld [vmem:[%s176 + $0x98] sm:$0xff]
        %v197 = vld [vmem:[%s176 + $0xa8] sm:$0xff]
        %v198 = vld [vmem:[%s176 + $0xb0] sm:$0xff]
        %v199 = vld [vmem:[%s176 + $0xc0] sm:$0xff]
        %v200 = vld [vmem:[%s176 + $0xc8] sm:$0xff]
        %v201 = vld [vmem:[%s176 + $0xd8] sm:$0xff]
        %v202 = vld [vmem:[%s176 + $0xe0] sm:$0xff]
        %v203 = vld [vmem:[%s176 + $0xf0] sm:$0xff]
        %v204 = vld [vmem:[%s176 + $0xf8] sm:$0xff]
        %v205 = vld [vmem:[%s176 + $0x108] sm:$0xff]
        %v206 = vld [vmem:[%s176 + $0x110] sm:$0xff]
        %v207 = vld [vmem:[%s176 + $0x120] sm:$0xff]
        %v208 = vld [vmem:[%s176 + $0x128] sm:$0xff]
        %v209 = vld [vmem:[%s176 + $0x138] sm:$0xff]
        %v210 = vld [vmem:[%s176 + $0x140] sm:$0xff]
        %v211 = vld [vmem:[%s176 + $0x150] sm:$0xff]
        %v212 = vld [vmem:[%s176 + $0x158] sm:$0xff]
        %v213 = vld [vmem:[%s176 + $0x168] sm:$0xff]
        %v214 = vld [vmem:[%s176 + $0x170] sm:$0xff]
        %vm215 = vcmask 31744
        %216 = vst.msk [vmem:[#allocation2] sm:$0xff] %vm215, %v183
        %217 = vst.msk [vmem:[#allocation2 + $0x8] sm:$0xff] %vm215, %v184
        %218 = vst.msk [vmem:[#allocation2 + $0x10] sm:$0xff] %vm215, %v185
        %219 = vst.msk [vmem:[#allocation2 + $0x18] sm:$0xff] %vm215, %v186
        %220 = vst.msk [vmem:[#allocation2 + $0x20] sm:$0xff] %vm215, %v187
        %221 = vst.msk [vmem:[#allocation2 + $0x28] sm:$0xff] %vm215, %v188
        %222 = vst.msk [vmem:[#allocation2 + $0x30] sm:$0xff] %vm215, %v189
        %223 = vst.msk [vmem:[#allocation2 + $0x38] sm:$0xff] %vm215, %v190
        %224 = vst.msk [vmem:[#allocation2 + $0x40] sm:$0xff] %vm215, %v191
        %225 = vst.msk [vmem:[#allocation2 + $0x48] sm:$0xff] %vm215, %v192
        %226 = vst.msk [vmem:[#allocation2 + $0x50] sm:$0xff] %vm215, %v193
        %227 = vst.msk [vmem:[#allocation2 + $0x58] sm:$0xff] %vm215, %v194
        %228 = vst.msk [vmem:[#allocation2 + $0x60] sm:$0xff] %vm215, %v195
        %229 = vst.msk [vmem:[#allocation2 + $0x68] sm:$0xff] %vm215, %v196
        %230 = vst.msk [vmem:[#allocation2 + $0x70] sm:$0xff] %vm215, %v197
        %231 = vst.msk [vmem:[#allocation2 + $0x78] sm:$0xff] %vm215, %v198
        %232 = vst.msk [vmem:[#allocation2 + $0x80] sm:$0xff] %vm215, %v199
        %233 = vst.msk [vmem:[#allocation2 + $0x88] sm:$0xff] %vm215, %v200
        %234 = vst.msk [vmem:[#allocation2 + $0x90] sm:$0xff] %vm215, %v201
        %235 = vst.msk [vmem:[#allocation2 + $0x98] sm:$0xff] %vm215, %v202
        %236 = vst.msk [vmem:[#allocation2 + $0xa0] sm:$0xff] %vm215, %v203
        %237 = vst.msk [vmem:[#allocation2 + $0xa8] sm:$0xff] %vm215, %v204
        %238 = vst.msk [vmem:[#allocation2 + $0xb0] sm:$0xff] %vm215, %v205
        %239 = vst.msk [vmem:[#allocation2 + $0xb8] sm:$0xff] %vm215, %v206
        %240 = vst.msk [vmem:[#allocation2 + $0xc0] sm:$0xff] %vm215, %v207
        %241 = vst.msk [vmem:[#allocation2 + $0xc8] sm:$0xff] %vm215, %v208
        %242 = vst.msk [vmem:[#allocation2 + $0xd0] sm:$0xff] %vm215, %v209
        %243 = vst.msk [vmem:[#allocation2 + $0xd8] sm:$0xff] %vm215, %v210
        %244 = vst.msk [vmem:[#allocation2 + $0xe0] sm:$0xff] %vm215, %v211
        %245 = vst.msk [vmem:[#allocation2 + $0xe8] sm:$0xff] %vm215, %v212
        %246 = vst.msk [vmem:[#allocation2 + $0xf0] sm:$0xff] %vm215, %v213
        %247 = vst.msk [vmem:[#allocation2 + $0xf8] sm:$0xff] %vm215, %v214
        %v248 = vld [vmem:[%s176 + $0x1] sm:$0xff]
        %v249 = vld [vmem:[%s176 + $0x9] sm:$0xff]
        %v250 = vld [vmem:[%s176 + $0x19] sm:$0xff]
        %v251 = vld [vmem:[%s176 + $0x21] sm:$0xff]
        %v252 = vld [vmem:[%s176 + $0x31] sm:$0xff]
        %v253 = vld [vmem:[%s176 + $0x39] sm:$0xff]
        %v254 = vld [vmem:[%s176 + $0x49] sm:$0xff]
        %v255 = vld [vmem:[%s176 + $0x51] sm:$0xff]
        %v256 = vld [vmem:[%s176 + $0x61] sm:$0xff]
        %v257 = vld [vmem:[%s176 + $0x69] sm:$0xff]
        %v258 = vld [vmem:[%s176 + $0x79] sm:$0xff]
        %v259 = vld [vmem:[%s176 + $0x81] sm:$0xff]
        %v260 = vld [vmem:[%s176 + $0x91] sm:$0xff]
        %v261 = vld [vmem:[%s176 + $0x99] sm:$0xff]
        %v262 = vld [vmem:[%s176 + $0xa9] sm:$0xff]
        %v263 = vld [vmem:[%s176 + $0xb1] sm:$0xff]
        %v264 = vld [vmem:[%s176 + $0xc1] sm:$0xff]
        %v265 = vld [vmem:[%s176 + $0xc9] sm:$0xff]
        %v266 = vld [vmem:[%s176 + $0xd9] sm:$0xff]
        %v267 = vld [vmem:[%s176 + $0xe1] sm:$0xff]
        %v268 = vld [vmem:[%s176 + $0xf1] sm:$0xff]
        %v269 = vld [vmem:[%s176 + $0xf9] sm:$0xff]
        %v270 = vld [vmem:[%s176 + $0x109] sm:$0xff]
        %v271 = vld [vmem:[%s176 + $0x111] sm:$0xff]
        %v272 = vld [vmem:[%s176 + $0x121] sm:$0xff]
        %v273 = vld [vmem:[%s176 + $0x129] sm:$0xff]
        %v274 = vld [vmem:[%s176 + $0x139] sm:$0xff]
        %v275 = vld [vmem:[%s176 + $0x141] sm:$0xff]
        %v276 = vld [vmem:[%s176 + $0x151] sm:$0xff]
        %v277 = vld [vmem:[%s176 + $0x159] sm:$0xff]
        %v278 = vld [vmem:[%s176 + $0x169] sm:$0xff]
        %v279 = vld [vmem:[%s176 + $0x171] sm:$0xff]
        %312 = vrot.lane.b32.xlu0 %v248, 4
        %v313 = vpop.permute.xlu0 %312
        %314 = vrot.lane.b32.xlu0 %v249, 4
        %v315 = vpop.permute.xlu0 %314
        %316 = vrot.lane.b32.xlu0 %v250, 4
        %v317 = vpop.permute.xlu0 %316
        %318 = vrot.lane.b32.xlu0 %v251, 4
        %v319 = vpop.permute.xlu0 %318
        %320 = vrot.lane.b32.xlu0 %v252, 4
        %v321 = vpop.permute.xlu0 %320
        %322 = vrot.lane.b32.xlu0 %v253, 4
        %v323 = vpop.permute.xlu0 %322
        %324 = vrot.lane.b32.xlu0 %v254, 4
        %v325 = vpop.permute.xlu0 %324
        %326 = vrot.lane.b32.xlu0 %v255, 4
        %v327 = vpop.permute.xlu0 %326
        %328 = vrot.lane.b32.xlu0 %v256, 4
        %v329 = vpop.permute.xlu0 %328
        %330 = vrot.lane.b32.xlu0 %v257, 4
        %v331 = vpop.permute.xlu0 %330
        %332 = vrot.lane.b32.xlu0 %v258, 4
        %v333 = vpop.permute.xlu0 %332
        %334 = vrot.lane.b32.xlu0 %v259, 4
        %v335 = vpop.permute.xlu0 %334
        %336 = vrot.lane.b32.xlu0 %v260, 4
        %v337 = vpop.permute.xlu0 %336
        %338 = vrot.lane.b32.xlu0 %v261, 4
        %v339 = vpop.permute.xlu0 %338
        %340 = vrot.lane.b32.xlu0 %v262, 4
        %v341 = vpop.permute.xlu0 %340
        %342 = vrot.lane.b32.xlu0 %v263, 4
        %v343 = vpop.permute.xlu0 %342
        %344 = vrot.lane.b32.xlu0 %v264, 4
        %v345 = vpop.permute.xlu0 %344
        %346 = vrot.lane.b32.xlu0 %v265, 4
        %v347 = vpop.permute.xlu0 %346
        %348 = vrot.lane.b32.xlu0 %v266, 4
        %v349 = vpop.permute.xlu0 %348
        %350 = vrot.lane.b32.xlu0 %v267, 4
        %v351 = vpop.permute.xlu0 %350
        %352 = vrot.lane.b32.xlu0 %v268, 4
        %v353 = vpop.permute.xlu0 %352
        %354 = vrot.lane.b32.xlu0 %v269, 4
        %v355 = vpop.permute.xlu0 %354
        %356 = vrot.lane.b32.xlu0 %v270, 4
        %v357 = vpop.permute.xlu0 %356
        %358 = vrot.lane.b32.xlu0 %v271, 4
        %v359 = vpop.permute.xlu0 %358
        %360 = vrot.lane.b32.xlu0 %v272, 4
        %v361 = vpop.permute.xlu0 %360
        %362 = vrot.lane.b32.xlu0 %v273, 4
        %v363 = vpop.permute.xlu0 %362
        %364 = vrot.lane.b32.xlu0 %v274, 4
        %v365 = vpop.permute.xlu0 %364
        %366 = vrot.lane.b32.xlu0 %v275, 4
        %v367 = vpop.permute.xlu0 %366
        %368 = vrot.lane.b32.xlu0 %v276, 4
        %v369 = vpop.permute.xlu0 %368
        %370 = vrot.lane.b32.xlu0 %v277, 4
        %v371 = vpop.permute.xlu0 %370
        %372 = vrot.lane.b32.xlu0 %v278, 4
        %v373 = vpop.permute.xlu0 %372
        %374 = vrot.lane.b32.xlu0 %v279, 4
        %v375 = vpop.permute.xlu0 %374
        %vm408 = vcmask 64544
        %409 = vst.msk [vmem:[#allocation2] sm:$0xff] %vm408, %v313
        %410 = vst.msk [vmem:[#allocation2 + $0x8] sm:$0xff] %vm408, %v315
        %411 = vst.msk [vmem:[#allocation2 + $0x10] sm:$0xff] %vm408, %v317
        %412 = vst.msk [vmem:[#allocation2 + $0x18] sm:$0xff] %vm408, %v319
        %413 = vst.msk [vmem:[#allocation2 + $0x20] sm:$0xff] %vm408, %v321
        %414 = vst.msk [vmem:[#allocation2 + $0x28] sm:$0xff] %vm408, %v323
        %415 = vst.msk [vmem:[#allocation2 + $0x30] sm:$0xff] %vm408, %v325
        %416 = vst.msk [vmem:[#allocation2 + $0x38] sm:$0xff] %vm408, %v327
        %417 = vst.msk [vmem:[#allocation2 + $0x40] sm:$0xff] %vm408, %v329
        %418 = vst.msk [vmem:[#allocation2 + $0x48] sm:$0xff] %vm408, %v331
        %419 = vst.msk [vmem:[#allocation2 + $0x50] sm:$0xff] %vm408, %v333
        %420 = vst.msk [vmem:[#allocation2 + $0x58] sm:$0xff] %vm408, %v335
        %421 = vst.msk [vmem:[#allocation2 + $0x60] sm:$0xff] %vm408, %v337
        %422 = vst.msk [vmem:[#allocation2 + $0x68] sm:$0xff] %vm408, %v339
        %423 = vst.msk [vmem:[#allocation2 + $0x70] sm:$0xff] %vm408, %v341
        %424 = vst.msk [vmem:[#allocation2 + $0x78] sm:$0xff] %vm408, %v343
        %425 = vst.msk [vmem:[#allocation2 + $0x80] sm:$0xff] %vm408, %v345
        %426 = vst.msk [vmem:[#allocation2 + $0x88] sm:$0xff] %vm408, %v347
        %427 = vst.msk [vmem:[#allocation2 + $0x90] sm:$0xff] %vm408, %v349
        %428 = vst.msk [vmem:[#allocation2 + $0x98] sm:$0xff] %vm408, %v351
        %429 = vst.msk [vmem:[#allocation2 + $0xa0] sm:$0xff] %vm408, %v353
        %430 = vst.msk [vmem:[#allocation2 + $0xa8] sm:$0xff] %vm408, %v355
        %431 = vst.msk [vmem:[#allocation2 + $0xb0] sm:$0xff] %vm408, %v357
        %432 = vst.msk [vmem:[#allocation2 + $0xb8] sm:$0xff] %vm408, %v359
        %433 = vst.msk [vmem:[#allocation2 + $0xc0] sm:$0xff] %vm408, %v361
        %434 = vst.msk [vmem:[#allocation2 + $0xc8] sm:$0xff] %vm408, %v363
        %435 = vst.msk [vmem:[#allocation2 + $0xd0] sm:$0xff] %vm408, %v365
        %436 = vst.msk [vmem:[#allocation2 + $0xd8] sm:$0xff] %vm408, %v367
        %437 = vst.msk [vmem:[#allocation2 + $0xe0] sm:$0xff] %vm408, %v369
        %438 = vst.msk [vmem:[#allocation2 + $0xe8] sm:$0xff] %vm408, %v371
        %439 = vst.msk [vmem:[#allocation2 + $0xf0] sm:$0xff] %vm408, %v373
        %440 = vst.msk [vmem:[#allocation2 + $0xf8] sm:$0xff] %vm408, %v375
        %v441 = vld [vmem:[%s176 + $0x2] sm:$0xff]
        %v442 = vld [vmem:[%s176 + $0xa] sm:$0xff]
        %v443 = vld [vmem:[%s176 + $0x1a] sm:$0xff]
        %v444 = vld [vmem:[%s176 + $0x22] sm:$0xff]
        %v445 = vld [vmem:[%s176 + $0x32] sm:$0xff]
        %v446 = vld [vmem:[%s176 + $0x3a] sm:$0xff]
        %v447 = vld [vmem:[%s176 + $0x4a] sm:$0xff]
        %v448 = vld [vmem:[%s176 + $0x52] sm:$0xff]
        %v449 = vld [vmem:[%s176 + $0x62] sm:$0xff]
        %v450 = vld [vmem:[%s176 + $0x6a] sm:$0xff]
        %v451 = vld [vmem:[%s176 + $0x7a] sm:$0xff]
        %v452 = vld [vmem:[%s176 + $0x82] sm:$0xff]
        %v453 = vld [vmem:[%s176 + $0x92] sm:$0xff]
        %v454 = vld [vmem:[%s176 + $0x9a] sm:$0xff]
        %v455 = vld [vmem:[%s176 + $0xaa] sm:$0xff]
        %v456 = vld [vmem:[%s176 + $0xb2] sm:$0xff]
        %v457 = vld [vmem:[%s176 + $0xc2] sm:$0xff]
        %v458 = vld [vmem:[%s176 + $0xca] sm:$0xff]
        %v459 = vld [vmem:[%s176 + $0xda] sm:$0xff]
        %v460 = vld [vmem:[%s176 + $0xe2] sm:$0xff]
        %v461 = vld [vmem:[%s176 + $0xf2] sm:$0xff]
        %v462 = vld [vmem:[%s176 + $0xfa] sm:$0xff]
        %v463 = vld [vmem:[%s176 + $0x10a] sm:$0xff]
        %v464 = vld [vmem:[%s176 + $0x112] sm:$0xff]
        %v465 = vld [vmem:[%s176 + $0x122] sm:$0xff]
        %v466 = vld [vmem:[%s176 + $0x12a] sm:$0xff]
        %v467 = vld [vmem:[%s176 + $0x13a] sm:$0xff]
        %v468 = vld [vmem:[%s176 + $0x142] sm:$0xff]
        %v469 = vld [vmem:[%s176 + $0x152] sm:$0xff]
        %v470 = vld [vmem:[%s176 + $0x15a] sm:$0xff]
        %v471 = vld [vmem:[%s176 + $0x16a] sm:$0xff]
        %v472 = vld [vmem:[%s176 + $0x172] sm:$0xff]
        %505 = vrot.lane.b32.xlu0 %v441, 8
        %v506 = vpop.permute.xlu0 %505
        %507 = vrot.lane.b32.xlu0 %v442, 8
        %v508 = vpop.permute.xlu0 %507
        %509 = vrot.lane.b32.xlu0 %v443, 8
        %v510 = vpop.permute.xlu0 %509
        %511 = vrot.lane.b32.xlu0 %v444, 8
        %v512 = vpop.permute.xlu0 %511
        %513 = vrot.lane.b32.xlu0 %v445, 8
        %v514 = vpop.permute.xlu0 %513
        %515 = vrot.lane.b32.xlu0 %v446, 8
        %v516 = vpop.permute.xlu0 %515
        %517 = vrot.lane.b32.xlu0 %v447, 8
        %v518 = vpop.permute.xlu0 %517
        %519 = vrot.lane.b32.xlu0 %v448, 8
        %v520 = vpop.permute.xlu0 %519
        %521 = vrot.lane.b32.xlu0 %v449, 8
        %v522 = vpop.permute.xlu0 %521
        %523 = vrot.lane.b32.xlu0 %v450, 8
        %v524 = vpop.permute.xlu0 %523
        %525 = vrot.lane.b32.xlu0 %v451, 8
        %v526 = vpop.permute.xlu0 %525
        %527 = vrot.lane.b32.xlu0 %v452, 8
        %v528 = vpop.permute.xlu0 %527
        %529 = vrot.lane.b32.xlu0 %v453, 8
        %v530 = vpop.permute.xlu0 %529
        %531 = vrot.lane.b32.xlu0 %v454, 8
        %v532 = vpop.permute.xlu0 %531
        %533 = vrot.lane.b32.xlu0 %v455, 8
        %v534 = vpop.permute.xlu0 %533
        %535 = vrot.lane.b32.xlu0 %v456, 8
        %v536 = vpop.permute.xlu0 %535
        %537 = vrot.lane.b32.xlu0 %v457, 8
        %v538 = vpop.permute.xlu0 %537
        %539 = vrot.lane.b32.xlu0 %v458, 8
        %v540 = vpop.permute.xlu0 %539
        %541 = vrot.lane.b32.xlu0 %v459, 8
        %v542 = vpop.permute.xlu0 %541
        %543 = vrot.lane.b32.xlu0 %v460, 8
        %v544 = vpop.permute.xlu0 %543
        %545 = vrot.lane.b32.xlu0 %v461, 8
        %v546 = vpop.permute.xlu0 %545
        %547 = vrot.lane.b32.xlu0 %v462, 8
        %v548 = vpop.permute.xlu0 %547
        %549 = vrot.lane.b32.xlu0 %v463, 8
        %v550 = vpop.permute.xlu0 %549
        %551 = vrot.lane.b32.xlu0 %v464, 8
        %v552 = vpop.permute.xlu0 %551
        %553 = vrot.lane.b32.xlu0 %v465, 8
        %v554 = vpop.permute.xlu0 %553
        %555 = vrot.lane.b32.xlu0 %v466, 8
        %v556 = vpop.permute.xlu0 %555
        %557 = vrot.lane.b32.xlu0 %v467, 8
        %v558 = vpop.permute.xlu0 %557
        %559 = vrot.lane.b32.xlu0 %v468, 8
        %v560 = vpop.permute.xlu0 %559
        %561 = vrot.lane.b32.xlu0 %v469, 8
        %v562 = vpop.permute.xlu0 %561
        %563 = vrot.lane.b32.xlu0 %v470, 8
        %v564 = vpop.permute.xlu0 %563
        %565 = vrot.lane.b32.xlu0 %v471, 8
        %v566 = vpop.permute.xlu0 %565
        %567 = vrot.lane.b32.xlu0 %v472, 8
        %v568 = vpop.permute.xlu0 %567
        %vm601 = vcmask 97344
        %602 = vst.msk [vmem:[#allocation2] sm:$0xff] %vm601, %v506
        %603 = vst.msk [vmem:[#allocation2 + $0x8] sm:$0xff] %vm601, %v508
        %604 = vst.msk [vmem:[#allocation2 + $0x10] sm:$0xff] %vm601, %v510
        %605 = vst.msk [vmem:[#allocation2 + $0x18] sm:$0xff] %vm601, %v512
        %606 = vst.msk [vmem:[#allocation2 + $0x20] sm:$0xff] %vm601, %v514
        %607 = vst.msk [vmem:[#allocation2 + $0x28] sm:$0xff] %vm601, %v516
        %608 = vst.msk [vmem:[#allocation2 + $0x30] sm:$0xff] %vm601, %v518
        %609 = vst.msk [vmem:[#allocation2 + $0x38] sm:$0xff] %vm601, %v520
        %610 = vst.msk [vmem:[#allocation2 + $0x40] sm:$0xff] %vm601, %v522
        %611 = vst.msk [vmem:[#allocation2 + $0x48] sm:$0xff] %vm601, %v524
        %612 = vst.msk [vmem:[#allocation2 + $0x50] sm:$0xff] %vm601, %v526
        %613 = vst.msk [vmem:[#allocation2 + $0x58] sm:$0xff] %vm601, %v528
        %614 = vst.msk [vmem:[#allocation2 + $0x60] sm:$0xff] %vm601, %v530
        %615 = vst.msk [vmem:[#allocation2 + $0x68] sm:$0xff] %vm601, %v532
        %616 = vst.msk [vmem:[#allocation2 + $0x70] sm:$0xff] %vm601, %v534
        %617 = vst.msk [vmem:[#allocation2 + $0x78] sm:$0xff] %vm601, %v536
        %618 = vst.msk [vmem:[#allocation2 + $0x80] sm:$0xff] %vm601, %v538
        %619 = vst.msk [vmem:[#allocation2 + $0x88] sm:$0xff] %vm601, %v540
        %620 = vst.msk [vmem:[#allocation2 + $0x90] sm:$0xff] %vm601, %v542
        %621 = vst.msk [vmem:[#allocation2 + $0x98] sm:$0xff] %vm601, %v544
        %622 = vst.msk [vmem:[#allocation2 + $0xa0] sm:$0xff] %vm601, %v546
        %623 = vst.msk [vmem:[#allocation2 + $0xa8] sm:$0xff] %vm601, %v548
        %624 = vst.msk [vmem:[#allocation2 + $0xb0] sm:$0xff] %vm601, %v550
        %625 = vst.msk [vmem:[#allocation2 + $0xb8] sm:$0xff] %vm601, %v552
        %626 = vst.msk [vmem:[#allocation2 + $0xc0] sm:$0xff] %vm601, %v554
        %627 = vst.msk [vmem:[#allocation2 + $0xc8] sm:$0xff] %vm601, %v556
        %628 = vst.msk [vmem:[#allocation2 + $0xd0] sm:$0xff] %vm601, %v558
        %629 = vst.msk [vmem:[#allocation2 + $0xd8] sm:$0xff] %vm601, %v560
        %630 = vst.msk [vmem:[#allocation2 + $0xe0] sm:$0xff] %vm601, %v562
        %631 = vst.msk [vmem:[#allocation2 + $0xe8] sm:$0xff] %vm601, %v564
        %632 = vst.msk [vmem:[#allocation2 + $0xf0] sm:$0xff] %vm601, %v566
        %633 = vst.msk [vmem:[#allocation2 + $0xf8] sm:$0xff] %vm601, %v568
        %s634 = scalar_lea.vmem %s176, 24
        %v635 = vld [vmem:[%s634] sm:$0xff]
        %v636 = vld [vmem:[%s634 + $0x8] sm:$0xff]
        %v637 = vld [vmem:[%s634 + $0x18] sm:$0xff]
        %v638 = vld [vmem:[%s634 + $0x20] sm:$0xff]
        %v639 = vld [vmem:[%s634 + $0x30] sm:$0xff]
        %v640 = vld [vmem:[%s634 + $0x38] sm:$0xff]
        %v641 = vld [vmem:[%s634 + $0x48] sm:$0xff]
        %v642 = vld [vmem:[%s634 + $0x50] sm:$0xff]
        %v643 = vld [vmem:[%s634 + $0x60] sm:$0xff]
        %v644 = vld [vmem:[%s634 + $0x68] sm:$0xff]
        %v645 = vld [vmem:[%s634 + $0x78] sm:$0xff]
        %v646 = vld [vmem:[%s634 + $0x80] sm:$0xff]
        %v647 = vld [vmem:[%s634 + $0x90] sm:$0xff]
        %v648 = vld [vmem:[%s634 + $0x98] sm:$0xff]
        %v649 = vld [vmem:[%s634 + $0xa8] sm:$0xff]
        %v650 = vld [vmem:[%s634 + $0xb0] sm:$0xff]
        %v651 = vld [vmem:[%s634 + $0xc0] sm:$0xff]
        %v652 = vld [vmem:[%s634 + $0xc8] sm:$0xff]
        %v653 = vld [vmem:[%s634 + $0xd8] sm:$0xff]
        %v654 = vld [vmem:[%s634 + $0xe0] sm:$0xff]
        %v655 = vld [vmem:[%s634 + $0xf0] sm:$0xff]
        %v656 = vld [vmem:[%s634 + $0xf8] sm:$0xff]
        %v657 = vld [vmem:[%s634 + $0x108] sm:$0xff]
        %v658 = vld [vmem:[%s634 + $0x110] sm:$0xff]
        %v659 = vld [vmem:[%s634 + $0x120] sm:$0xff]
        %v660 = vld [vmem:[%s634 + $0x128] sm:$0xff]
        %v661 = vld [vmem:[%s634 + $0x138] sm:$0xff]
        %v662 = vld [vmem:[%s634 + $0x140] sm:$0xff]
        %v663 = vld [vmem:[%s634 + $0x150] sm:$0xff]
        %v664 = vld [vmem:[%s634 + $0x158] sm:$0xff]
        %v665 = vld [vmem:[%s634 + $0x168] sm:$0xff]
        %v666 = vld [vmem:[%s634 + $0x170] sm:$0xff]
        %699 = vrot.lane.b32.xlu0 %v635, 12
        %v700 = vpop.permute.xlu0 %699
        %701 = vrot.lane.b32.xlu0 %v636, 12
        %v702 = vpop.permute.xlu0 %701
        %703 = vrot.lane.b32.xlu0 %v637, 12
        %v704 = vpop.permute.xlu0 %703
        %705 = vrot.lane.b32.xlu0 %v638, 12
        %v706 = vpop.permute.xlu0 %705
        %707 = vrot.lane.b32.xlu0 %v639, 12
        %v708 = vpop.permute.xlu0 %707
        %709 = vrot.lane.b32.xlu0 %v640, 12
        %v710 = vpop.permute.xlu0 %709
        %711 = vrot.lane.b32.xlu0 %v641, 12
        %v712 = vpop.permute.xlu0 %711
        %713 = vrot.lane.b32.xlu0 %v642, 12
        %v714 = vpop.permute.xlu0 %713
        %715 = vrot.lane.b32.xlu0 %v643, 12
        %v716 = vpop.permute.xlu0 %715
        %717 = vrot.lane.b32.xlu0 %v644, 12
        %v718 = vpop.permute.xlu0 %717
        %719 = vrot.lane.b32.xlu0 %v645, 12
        %v720 = vpop.permute.xlu0 %719
        %721 = vrot.lane.b32.xlu0 %v646, 12
        %v722 = vpop.permute.xlu0 %721
        %723 = vrot.lane.b32.xlu0 %v647, 12
        %v724 = vpop.permute.xlu0 %723
        %725 = vrot.lane.b32.xlu0 %v648, 12
        %v726 = vpop.permute.xlu0 %725
        %727 = vrot.lane.b32.xlu0 %v649, 12
        %v728 = vpop.permute.xlu0 %727
        %729 = vrot.lane.b32.xlu0 %v650, 12
        %v730 = vpop.permute.xlu0 %729
        %731 = vrot.lane.b32.xlu0 %v651, 12
        %v732 = vpop.permute.xlu0 %731
        %733 = vrot.lane.b32.xlu0 %v652, 12
        %v734 = vpop.permute.xlu0 %733
        %735 = vrot.lane.b32.xlu0 %v653, 12
        %v736 = vpop.permute.xlu0 %735
        %737 = vrot.lane.b32.xlu0 %v654, 12
        %v738 = vpop.permute.xlu0 %737
        %739 = vrot.lane.b32.xlu0 %v655, 12
        %v740 = vpop.permute.xlu0 %739
        %741 = vrot.lane.b32.xlu0 %v656, 12
        %v742 = vpop.permute.xlu0 %741
        %743 = vrot.lane.b32.xlu0 %v657, 12
        %v744 = vpop.permute.xlu0 %743
        %745 = vrot.lane.b32.xlu0 %v658, 12
        %v746 = vpop.permute.xlu0 %745
        %747 = vrot.lane.b32.xlu0 %v659, 12
        %v748 = vpop.permute.xlu0 %747
        %749 = vrot.lane.b32.xlu0 %v660, 12
        %v750 = vpop.permute.xlu0 %749
        %751 = vrot.lane.b32.xlu0 %v661, 12
        %v752 = vpop.permute.xlu0 %751
        %753 = vrot.lane.b32.xlu0 %v662, 12
        %v754 = vpop.permute.xlu0 %753
        %755 = vrot.lane.b32.xlu0 %v663, 12
        %v756 = vpop.permute.xlu0 %755
        %757 = vrot.lane.b32.xlu0 %v664, 12
        %v758 = vpop.permute.xlu0 %757
        %759 = vrot.lane.b32.xlu0 %v665, 12
        %v760 = vpop.permute.xlu0 %759
        %761 = vrot.lane.b32.xlu0 %v666, 12
        %v762 = vpop.permute.xlu0 %761
        %vm795 = vcmask 130144
        %796 = vst.msk [vmem:[#allocation2] sm:$0xff] %vm795, %v700
        %797 = vst.msk [vmem:[#allocation2 + $0x8] sm:$0xff] %vm795, %v702
        %798 = vst.msk [vmem:[#allocation2 + $0x10] sm:$0xff] %vm795, %v704
        %799 = vst.msk [vmem:[#allocation2 + $0x18] sm:$0xff] %vm795, %v706
        %800 = vst.msk [vmem:[#allocation2 + $0x20] sm:$0xff] %vm795, %v708
        %801 = vst.msk [vmem:[#allocation2 + $0x28] sm:$0xff] %vm795, %v710
        %802 = vst.msk [vmem:[#allocation2 + $0x30] sm:$0xff] %vm795, %v712
        %803 = vst.msk [vmem:[#allocation2 + $0x38] sm:$0xff] %vm795, %v714
        %804 = vst.msk [vmem:[#allocation2 + $0x40] sm:$0xff] %vm795, %v716
        %805 = vst.msk [vmem:[#allocation2 + $0x48] sm:$0xff] %vm795, %v718
        %806 = vst.msk [vmem:[#allocation2 + $0x50] sm:$0xff] %vm795, %v720
        %807 = vst.msk [vmem:[#allocation2 + $0x58] sm:$0xff] %vm795, %v722
        %808 = vst.msk [vmem:[#allocation2 + $0x60] sm:$0xff] %vm795, %v724
        %809 = vst.msk [vmem:[#allocation2 + $0x68] sm:$0xff] %vm795, %v726
        %810 = vst.msk [vmem:[#allocation2 + $0x70] sm:$0xff] %vm795, %v728
        %811 = vst.msk [vmem:[#allocation2 + $0x78] sm:$0xff] %vm795, %v730
        %812 = vst.msk [vmem:[#allocation2 + $0x80] sm:$0xff] %vm795, %v732
        %813 = vst.msk [vmem:[#allocation2 + $0x88] sm:$0xff] %vm795, %v734
        %814 = vst.msk [vmem:[#allocation2 + $0x90] sm:$0xff] %vm795, %v736
        %815 = vst.msk [vmem:[#allocation2 + $0x98] sm:$0xff] %vm795, %v738
        %816 = vst.msk [vmem:[#allocation2 + $0xa0] sm:$0xff] %vm795, %v740
        %817 = vst.msk [vmem:[#allocation2 + $0xa8] sm:$0xff] %vm795, %v742
        %818 = vst.msk [vmem:[#allocation2 + $0xb0] sm:$0xff] %vm795, %v744
        %819 = vst.msk [vmem:[#allocation2 + $0xb8] sm:$0xff] %vm795, %v746
        %820 = vst.msk [vmem:[#allocation2 + $0xc0] sm:$0xff] %vm795, %v748
        %821 = vst.msk [vmem:[#allocation2 + $0xc8] sm:$0xff] %vm795, %v750
        %822 = vst.msk [vmem:[#allocation2 + $0xd0] sm:$0xff] %vm795, %v752
        %823 = vst.msk [vmem:[#allocation2 + $0xd8] sm:$0xff] %vm795, %v754
        %824 = vst.msk [vmem:[#allocation2 + $0xe0] sm:$0xff] %vm795, %v756
        %825 = vst.msk [vmem:[#allocation2 + $0xe8] sm:$0xff] %vm795, %v758
        %826 = vst.msk [vmem:[#allocation2 + $0xf0] sm:$0xff] %vm795, %v760
        %827 = vst.msk [vmem:[#allocation2 + $0xf8] sm:$0xff] %vm795, %v762
        %v828 = vld [vmem:[%s634 + $0x1] sm:$0xff]
        %v829 = vld [vmem:[%s634 + $0x9] sm:$0xff]
        %v830 = vld [vmem:[%s634 + $0x19] sm:$0xff]
        %v831 = vld [vmem:[%s634 + $0x21] sm:$0xff]
        %v832 = vld [vmem:[%s634 + $0x31] sm:$0xff]
        %v833 = vld [vmem:[%s634 + $0x39] sm:$0xff]
        %v834 = vld [vmem:[%s634 + $0x49] sm:$0xff]
        %v835 = vld [vmem:[%s634 + $0x51] sm:$0xff]
        %v836 = vld [vmem:[%s634 + $0x61] sm:$0xff]
        %v837 = vld [vmem:[%s634 + $0x69] sm:$0xff]
        %v838 = vld [vmem:[%s634 + $0x79] sm:$0xff]
        %v839 = vld [vmem:[%s634 + $0x81] sm:$0xff]
        %v840 = vld [vmem:[%s634 + $0x91] sm:$0xff]
        %v841 = vld [vmem:[%s634 + $0x99] sm:$0xff]
        %v842 = vld [vmem:[%s634 + $0xa9] sm:$0xff]
        %v843 = vld [vmem:[%s634 + $0xb1] sm:$0xff]
        %v844 = vld [vmem:[%s634 + $0xc1] sm:$0xff]
        %v845 = vld [vmem:[%s634 + $0xc9] sm:$0xff]
        %v846 = vld [vmem:[%s634 + $0xd9] sm:$0xff]
        %v847 = vld [vmem:[%s634 + $0xe1] sm:$0xff]
        %v848 = vld [vmem:[%s634 + $0xf1] sm:$0xff]
        %v849 = vld [vmem:[%s634 + $0xf9] sm:$0xff]
        %v850 = vld [vmem:[%s634 + $0x109] sm:$0xff]
        %v851 = vld [vmem:[%s634 + $0x111] sm:$0xff]
        %v852 = vld [vmem:[%s634 + $0x121] sm:$0xff]
        %v853 = vld [vmem:[%s634 + $0x129] sm:$0xff]
        %v854 = vld [vmem:[%s634 + $0x139] sm:$0xff]
        %v855 = vld [vmem:[%s634 + $0x141] sm:$0xff]
        %v856 = vld [vmem:[%s634 + $0x151] sm:$0xff]
        %v857 = vld [vmem:[%s634 + $0x159] sm:$0xff]
        %v858 = vld [vmem:[%s634 + $0x169] sm:$0xff]
        %v859 = vld [vmem:[%s634 + $0x171] sm:$0xff]
        %892 = vrot.lane.b32.xlu0 %v828, 16
        %v893 = vpop.permute.xlu0 %892
        %894 = vrot.lane.b32.xlu0 %v829, 16
        %v895 = vpop.permute.xlu0 %894
        %896 = vrot.lane.b32.xlu0 %v830, 16
        %v897 = vpop.permute.xlu0 %896
        %898 = vrot.lane.b32.xlu0 %v831, 16
        %v899 = vpop.permute.xlu0 %898
        %900 = vrot.lane.b32.xlu0 %v832, 16
        %v901 = vpop.permute.xlu0 %900
        %902 = vrot.lane.b32.xlu0 %v833, 16
        %v903 = vpop.permute.xlu0 %902
        %904 = vrot.lane.b32.xlu0 %v834, 16
        %v905 = vpop.permute.xlu0 %904
        %906 = vrot.lane.b32.xlu0 %v835, 16
        %v907 = vpop.permute.xlu0 %906
        %908 = vrot.lane.b32.xlu0 %v836, 16
        %v909 = vpop.permute.xlu0 %908
        %910 = vrot.lane.b32.xlu0 %v837, 16
        %v911 = vpop.permute.xlu0 %910
        %912 = vrot.lane.b32.xlu0 %v838, 16
        %v913 = vpop.permute.xlu0 %912
        %914 = vrot.lane.b32.xlu0 %v839, 16
        %v915 = vpop.permute.xlu0 %914
        %916 = vrot.lane.b32.xlu0 %v840, 16
        %v917 = vpop.permute.xlu0 %916
        %918 = vrot.lane.b32.xlu0 %v841, 16
        %v919 = vpop.permute.xlu0 %918
        %920 = vrot.lane.b32.xlu0 %v842, 16
        %v921 = vpop.permute.xlu0 %920
        %922 = vrot.lane.b32.xlu0 %v843, 16
        %v923 = vpop.permute.xlu0 %922
        %924 = vrot.lane.b32.xlu0 %v844, 16
        %v925 = vpop.permute.xlu0 %924
        %926 = vrot.lane.b32.xlu0 %v845, 16
        %v927 = vpop.permute.xlu0 %926
        %928 = vrot.lane.b32.xlu0 %v846, 16
        %v929 = vpop.permute.xlu0 %928
        %930 = vrot.lane.b32.xlu0 %v847, 16
        %v931 = vpop.permute.xlu0 %930
        %932 = vrot.lane.b32.xlu0 %v848, 16
        %v933 = vpop.permute.xlu0 %932
        %934 = vrot.lane.b32.xlu0 %v849, 16
        %v935 = vpop.permute.xlu0 %934
        %936 = vrot.lane.b32.xlu0 %v850, 16
        %v937 = vpop.permute.xlu0 %936
        %938 = vrot.lane.b32.xlu0 %v851, 16
        %v939 = vpop.permute.xlu0 %938
        %940 = vrot.lane.b32.xlu0 %v852, 16
        %v941 = vpop.permute.xlu0 %940
        %942 = vrot.lane.b32.xlu0 %v853, 16
        %v943 = vpop.permute.xlu0 %942
        %944 = vrot.lane.b32.xlu0 %v854, 16
        %v945 = vpop.permute.xlu0 %944
        %946 = vrot.lane.b32.xlu0 %v855, 16
        %v947 = vpop.permute.xlu0 %946
        %948 = vrot.lane.b32.xlu0 %v856, 16
        %v949 = vpop.permute.xlu0 %948
        %950 = vrot.lane.b32.xlu0 %v857, 16
        %v951 = vpop.permute.xlu0 %950
        %952 = vrot.lane.b32.xlu0 %v858, 16
        %v953 = vpop.permute.xlu0 %952
        %954 = vrot.lane.b32.xlu0 %v859, 16
        %v955 = vpop.permute.xlu0 %954
        %vm988 = vcmask 162944
        %989 = vst.msk [vmem:[#allocation2] sm:$0xff] %vm988, %v893
        %990 = vst.msk [vmem:[#allocation2 + $0x8] sm:$0xff] %vm988, %v895
        %991 = vst.msk [vmem:[#allocation2 + $0x10] sm:$0xff] %vm988, %v897
        %992 = vst.msk [vmem:[#allocation2 + $0x18] sm:$0xff] %vm988, %v899
        %993 = vst.msk [vmem:[#allocation2 + $0x20] sm:$0xff] %vm988, %v901
        %994 = vst.msk [vmem:[#allocation2 + $0x28] sm:$0xff] %vm988, %v903
        %995 = vst.msk [vmem:[#allocation2 + $0x30] sm:$0xff] %vm988, %v905
        %996 = vst.msk [vmem:[#allocation2 + $0x38] sm:$0xff] %vm988, %v907
        %997 = vst.msk [vmem:[#allocation2 + $0x40] sm:$0xff] %vm988, %v909
        %998 = vst.msk [vmem:[#allocation2 + $0x48] sm:$0xff] %vm988, %v911
        %999 = vst.msk [vmem:[#allocation2 + $0x50] sm:$0xff] %vm988, %v913
        %1000 = vst.msk [vmem:[#allocation2 + $0x58] sm:$0xff] %vm988, %v915
        %1001 = vst.msk [vmem:[#allocation2 + $0x60] sm:$0xff] %vm988, %v917
        %1002 = vst.msk [vmem:[#allocation2 + $0x68] sm:$0xff] %vm988, %v919
        %1003 = vst.msk [vmem:[#allocation2 + $0x70] sm:$0xff] %vm988, %v921
        %1004 = vst.msk [vmem:[#allocation2 + $0x78] sm:$0xff] %vm988, %v923
        %1005 = vst.msk [vmem:[#allocation2 + $0x80] sm:$0xff] %vm988, %v925
        %1006 = vst.msk [vmem:[#allocation2 + $0x88] sm:$0xff] %vm988, %v927
        %1007 = vst.msk [vmem:[#allocation2 + $0x90] sm:$0xff] %vm988, %v929
        %1008 = vst.msk [vmem:[#allocation2 + $0x98] sm:$0xff] %vm988, %v931
        %1009 = vst.msk [vmem:[#allocation2 + $0xa0] sm:$0xff] %vm988, %v933
        %1010 = vst.msk [vmem:[#allocation2 + $0xa8] sm:$0xff] %vm988, %v935
        %1011 = vst.msk [vmem:[#allocation2 + $0xb0] sm:$0xff] %vm988, %v937
        %1012 = vst.msk [vmem:[#allocation2 + $0xb8] sm:$0xff] %vm988, %v939
        %1013 = vst.msk [vmem:[#allocation2 + $0xc0] sm:$0xff] %vm988, %v941
        %1014 = vst.msk [vmem:[#allocation2 + $0xc8] sm:$0xff] %vm988, %v943
        %1015 = vst.msk [vmem:[#allocation2 + $0xd0] sm:$0xff] %vm988, %v945
        %1016 = vst.msk [vmem:[#allocation2 + $0xd8] sm:$0xff] %vm988, %v947
        %1017 = vst.msk [vmem:[#allocation2 + $0xe0] sm:$0xff] %vm988, %v949
        %1018 = vst.msk [vmem:[#allocation2 + $0xe8] sm:$0xff] %vm988, %v951
        %1019 = vst.msk [vmem:[#allocation2 + $0xf0] sm:$0xff] %vm988, %v953
        %1020 = vst.msk [vmem:[#allocation2 + $0xf8] sm:$0xff] %vm988, %v955
        %v1021 = vld [vmem:[%s634 + $0x2] sm:$0xff]
        %v1022 = vld [vmem:[%s634 + $0xa] sm:$0xff]
        %v1023 = vld [vmem:[%s634 + $0x1a] sm:$0xff]
        %v1024 = vld [vmem:[%s634 + $0x22] sm:$0xff]
        %v1025 = vld [vmem:[%s634 + $0x32] sm:$0xff]
        %v1026 = vld [vmem:[%s634 + $0x3a] sm:$0xff]
        %v1027 = vld [vmem:[%s634 + $0x4a] sm:$0xff]
        %v1028 = vld [vmem:[%s634 + $0x52] sm:$0xff]
        %v1029 = vld [vmem:[%s634 + $0x62] sm:$0xff]
        %v1030 = vld [vmem:[%s634 + $0x6a] sm:$0xff]
        %v1031 = vld [vmem:[%s634 + $0x7a] sm:$0xff]
        %v1032 = vld [vmem:[%s634 + $0x82] sm:$0xff]
        %v1033 = vld [vmem:[%s634 + $0x92] sm:$0xff]
        %v1034 = vld [vmem:[%s634 + $0x9a] sm:$0xff]
        %v1035 = vld [vmem:[%s634 + $0xaa] sm:$0xff]
        %v1036 = vld [vmem:[%s634 + $0xb2] sm:$0xff]
        %v1037 = vld [vmem:[%s634 + $0xc2] sm:$0xff]
        %v1038 = vld [vmem:[%s634 + $0xca] sm:$0xff]
        %v1039 = vld [vmem:[%s634 + $0xda] sm:$0xff]
        %v1040 = vld [vmem:[%s634 + $0xe2] sm:$0xff]
        %v1041 = vld [vmem:[%s634 + $0xf2] sm:$0xff]
        %v1042 = vld [vmem:[%s634 + $0xfa] sm:$0xff]
        %v1043 = vld [vmem:[%s634 + $0x10a] sm:$0xff]
        %v1044 = vld [vmem:[%s634 + $0x112] sm:$0xff]
        %v1045 = vld [vmem:[%s634 + $0x122] sm:$0xff]
        %v1046 = vld [vmem:[%s634 + $0x12a] sm:$0xff]
        %v1047 = vld [vmem:[%s634 + $0x13a] sm:$0xff]
        %v1048 = vld [vmem:[%s634 + $0x142] sm:$0xff]
        %v1049 = vld [vmem:[%s634 + $0x152] sm:$0xff]
        %v1050 = vld [vmem:[%s634 + $0x15a] sm:$0xff]
        %v1051 = vld [vmem:[%s634 + $0x16a] sm:$0xff]
        %v1052 = vld [vmem:[%s634 + $0x172] sm:$0xff]
        %1085 = vrot.lane.b32.xlu0 %v1021, 20
        %v1086 = vpop.permute.xlu0 %1085
        %1087 = vrot.lane.b32.xlu0 %v1022, 20
        %v1088 = vpop.permute.xlu0 %1087
        %1089 = vrot.lane.b32.xlu0 %v1023, 20
        %v1090 = vpop.permute.xlu0 %1089
        %1091 = vrot.lane.b32.xlu0 %v1024, 20
        %v1092 = vpop.permute.xlu0 %1091
        %1093 = vrot.lane.b32.xlu0 %v1025, 20
        %v1094 = vpop.permute.xlu0 %1093
        %1095 = vrot.lane.b32.xlu0 %v1026, 20
        %v1096 = vpop.permute.xlu0 %1095
        %1097 = vrot.lane.b32.xlu0 %v1027, 20
        %v1098 = vpop.permute.xlu0 %1097
        %1099 = vrot.lane.b32.xlu0 %v1028, 20
        %v1100 = vpop.permute.xlu0 %1099
        %1101 = vrot.lane.b32.xlu0 %v1029, 20
        %v1102 = vpop.permute.xlu0 %1101
        %1103 = vrot.lane.b32.xlu0 %v1030, 20
        %v1104 = vpop.permute.xlu0 %1103
        %1105 = vrot.lane.b32.xlu0 %v1031, 20
        %v1106 = vpop.permute.xlu0 %1105
        %1107 = vrot.lane.b32.xlu0 %v1032, 20
        %v1108 = vpop.permute.xlu0 %1107
        %1109 = vrot.lane.b32.xlu0 %v1033, 20
        %v1110 = vpop.permute.xlu0 %1109
        %1111 = vrot.lane.b32.xlu0 %v1034, 20
        %v1112 = vpop.permute.xlu0 %1111
        %1113 = vrot.lane.b32.xlu0 %v1035, 20
        %v1114 = vpop.permute.xlu0 %1113
        %1115 = vrot.lane.b32.xlu0 %v1036, 20
        %v1116 = vpop.permute.xlu0 %1115
        %1117 = vrot.lane.b32.xlu0 %v1037, 20
        %v1118 = vpop.permute.xlu0 %1117
        %1119 = vrot.lane.b32.xlu0 %v1038, 20
        %v1120 = vpop.permute.xlu0 %1119
        %1121 = vrot.lane.b32.xlu0 %v1039, 20
        %v1122 = vpop.permute.xlu0 %1121
        %1123 = vrot.lane.b32.xlu0 %v1040, 20
        %v1124 = vpop.permute.xlu0 %1123
        %1125 = vrot.lane.b32.xlu0 %v1041, 20
        %v1126 = vpop.permute.xlu0 %1125
        %1127 = vrot.lane.b32.xlu0 %v1042, 20
        %v1128 = vpop.permute.xlu0 %1127
        %1129 = vrot.lane.b32.xlu0 %v1043, 20
        %v1130 = vpop.permute.xlu0 %1129
        %1131 = vrot.lane.b32.xlu0 %v1044, 20
        %v1132 = vpop.permute.xlu0 %1131
        %1133 = vrot.lane.b32.xlu0 %v1045, 20
        %v1134 = vpop.permute.xlu0 %1133
        %1135 = vrot.lane.b32.xlu0 %v1046, 20
        %v1136 = vpop.permute.xlu0 %1135
        %1137 = vrot.lane.b32.xlu0 %v1047, 20
        %v1138 = vpop.permute.xlu0 %1137
        %1139 = vrot.lane.b32.xlu0 %v1048, 20
        %v1140 = vpop.permute.xlu0 %1139
        %1141 = vrot.lane.b32.xlu0 %v1049, 20
        %v1142 = vpop.permute.xlu0 %1141
        %1143 = vrot.lane.b32.xlu0 %v1050, 20
        %v1144 = vpop.permute.xlu0 %1143
        %1145 = vrot.lane.b32.xlu0 %v1051, 20
        %v1146 = vpop.permute.xlu0 %1145
        %1147 = vrot.lane.b32.xlu0 %v1052, 20
        %v1148 = vpop.permute.xlu0 %1147
        %vm1181 = vcmask 195744
        %1182 = vst.msk [vmem:[#allocation2] sm:$0xff] %vm1181, %v1086
        %1183 = vst.msk [vmem:[#allocation2 + $0x8] sm:$0xff] %vm1181, %v1088
        %1184 = vst.msk [vmem:[#allocation2 + $0x10] sm:$0xff] %vm1181, %v1090
        %1185 = vst.msk [vmem:[#allocation2 + $0x18] sm:$0xff] %vm1181, %v1092
        %1186 = vst.msk [vmem:[#allocation2 + $0x20] sm:$0xff] %vm1181, %v1094
        %1187 = vst.msk [vmem:[#allocation2 + $0x28] sm:$0xff] %vm1181, %v1096
        %1188 = vst.msk [vmem:[#allocation2 + $0x30] sm:$0xff] %vm1181, %v1098
        %1189 = vst.msk [vmem:[#allocation2 + $0x38] sm:$0xff] %vm1181, %v1100
        %1190 = vst.msk [vmem:[#allocation2 + $0x40] sm:$0xff] %vm1181, %v1102
        %1191 = vst.msk [vmem:[#allocation2 + $0x48] sm:$0xff] %vm1181, %v1104
        %1192 = vst.msk [vmem:[#allocation2 + $0x50] sm:$0xff] %vm1181, %v1106
        %1193 = vst.msk [vmem:[#allocation2 + $0x58] sm:$0xff] %vm1181, %v1108
        %1194 = vst.msk [vmem:[#allocation2 + $0x60] sm:$0xff] %vm1181, %v1110
        %1195 = vst.msk [vmem:[#allocation2 + $0x68] sm:$0xff] %vm1181, %v1112
        %1196 = vst.msk [vmem:[#allocation2 + $0x70] sm:$0xff] %vm1181, %v1114
        %1197 = vst.msk [vmem:[#allocation2 + $0x78] sm:$0xff] %vm1181, %v1116
        %1198 = vst.msk [vmem:[#allocation2 + $0x80] sm:$0xff] %vm1181, %v1118
        %1199 = vst.msk [vmem:[#allocation2 + $0x88] sm:$0xff] %vm1181, %v1120
        %1200 = vst.msk [vmem:[#allocation2 + $0x90] sm:$0xff] %vm1181, %v1122
        %1201 = vst.msk [vmem:[#allocation2 + $0x98] sm:$0xff] %vm1181, %v1124
        %1202 = vst.msk [vmem:[#allocation2 + $0xa0] sm:$0xff] %vm1181, %v1126
        %1203 = vst.msk [vmem:[#allocation2 + $0xa8] sm:$0xff] %vm1181, %v1128
        %1204 = vst.msk [vmem:[#allocation2 + $0xb0] sm:$0xff] %vm1181, %v1130
        %1205 = vst.msk [vmem:[#allocation2 + $0xb8] sm:$0xff] %vm1181, %v1132
        %1206 = vst.msk [vmem:[#allocation2 + $0xc0] sm:$0xff] %vm1181, %v1134
        %1207 = vst.msk [vmem:[#allocation2 + $0xc8] sm:$0xff] %vm1181, %v1136
        %1208 = vst.msk [vmem:[#allocation2 + $0xd0] sm:$0xff] %vm1181, %v1138
        %1209 = vst.msk [vmem:[#allocation2 + $0xd8] sm:$0xff] %vm1181, %v1140
        %1210 = vst.msk [vmem:[#allocation2 + $0xe0] sm:$0xff] %vm1181, %v1142
        %1211 = vst.msk [vmem:[#allocation2 + $0xe8] sm:$0xff] %vm1181, %v1144
        %1212 = vst.msk [vmem:[#allocation2 + $0xf0] sm:$0xff] %vm1181, %v1146
        %1213 = vst.msk [vmem:[#allocation2 + $0xf8] sm:$0xff] %vm1181, %v1148
        %s1214 = scalar_lea.vmem %s176, 48
        %v1215 = vld [vmem:[%s1214] sm:$0xff]
        %v1216 = vld [vmem:[%s1214 + $0x8] sm:$0xff]
        %v1217 = vld [vmem:[%s1214 + $0x18] sm:$0xff]
        %v1218 = vld [vmem:[%s1214 + $0x20] sm:$0xff]
        %v1219 = vld [vmem:[%s1214 + $0x30] sm:$0xff]
        %v1220 = vld [vmem:[%s1214 + $0x38] sm:$0xff]
        %v1221 = vld [vmem:[%s1214 + $0x48] sm:$0xff]
        %v1222 = vld [vmem:[%s1214 + $0x50] sm:$0xff]
        %v1223 = vld [vmem:[%s1214 + $0x60] sm:$0xff]
        %v1224 = vld [vmem:[%s1214 + $0x68] sm:$0xff]
        %v1225 = vld [vmem:[%s1214 + $0x78] sm:$0xff]
        %v1226 = vld [vmem:[%s1214 + $0x80] sm:$0xff]
        %v1227 = vld [vmem:[%s1214 + $0x90] sm:$0xff]
        %v1228 = vld [vmem:[%s1214 + $0x98] sm:$0xff]
        %v1229 = vld [vmem:[%s1214 + $0xa8] sm:$0xff]
        %v1230 = vld [vmem:[%s1214 + $0xb0] sm:$0xff]
        %v1231 = vld [vmem:[%s1214 + $0xc0] sm:$0xff]
        %v1232 = vld [vmem:[%s1214 + $0xc8] sm:$0xff]
        %v1233 = vld [vmem:[%s1214 + $0xd8] sm:$0xff]
        %v1234 = vld [vmem:[%s1214 + $0xe0] sm:$0xff]
        %v1235 = vld [vmem:[%s1214 + $0xf0] sm:$0xff]
        %v1236 = vld [vmem:[%s1214 + $0xf8] sm:$0xff]
        %v1237 = vld [vmem:[%s1214 + $0x108] sm:$0xff]
        %v1238 = vld [vmem:[%s1214 + $0x110] sm:$0xff]
        %v1239 = vld [vmem:[%s1214 + $0x120] sm:$0xff]
        %v1240 = vld [vmem:[%s1214 + $0x128] sm:$0xff]
        %v1241 = vld [vmem:[%s1214 + $0x138] sm:$0xff]
        %v1242 = vld [vmem:[%s1214 + $0x140] sm:$0xff]
        %v1243 = vld [vmem:[%s1214 + $0x150] sm:$0xff]
        %v1244 = vld [vmem:[%s1214 + $0x158] sm:$0xff]
        %v1245 = vld [vmem:[%s1214 + $0x168] sm:$0xff]
        %v1246 = vld [vmem:[%s1214 + $0x170] sm:$0xff]
        %1279 = vrot.lane.b32.xlu0 %v1215, 24
        %v1280 = vpop.permute.xlu0 %1279
        %1281 = vrot.lane.b32.xlu0 %v1216, 24
        %v1282 = vpop.permute.xlu0 %1281
        %1283 = vrot.lane.b32.xlu0 %v1217, 24
        %v1284 = vpop.permute.xlu0 %1283
        %1285 = vrot.lane.b32.xlu0 %v1218, 24
        %v1286 = vpop.permute.xlu0 %1285
        %1287 = vrot.lane.b32.xlu0 %v1219, 24
        %v1288 = vpop.permute.xlu0 %1287
        %1289 = vrot.lane.b32.xlu0 %v1220, 24
        %v1290 = vpop.permute.xlu0 %1289
        %1291 = vrot.lane.b32.xlu0 %v1221, 24
        %v1292 = vpop.permute.xlu0 %1291
        %1293 = vrot.lane.b32.xlu0 %v1222, 24
        %v1294 = vpop.permute.xlu0 %1293
        %1295 = vrot.lane.b32.xlu0 %v1223, 24
        %v1296 = vpop.permute.xlu0 %1295
        %1297 = vrot.lane.b32.xlu0 %v1224, 24
        %v1298 = vpop.permute.xlu0 %1297
        %1299 = vrot.lane.b32.xlu0 %v1225, 24
        %v1300 = vpop.permute.xlu0 %1299
        %1301 = vrot.lane.b32.xlu0 %v1226, 24
        %v1302 = vpop.permute.xlu0 %1301
        %1303 = vrot.lane.b32.xlu0 %v1227, 24
        %v1304 = vpop.permute.xlu0 %1303
        %1305 = vrot.lane.b32.xlu0 %v1228, 24
        %v1306 = vpop.permute.xlu0 %1305
        %1307 = vrot.lane.b32.xlu0 %v1229, 24
        %v1308 = vpop.permute.xlu0 %1307
        %1309 = vrot.lane.b32.xlu0 %v1230, 24
        %v1310 = vpop.permute.xlu0 %1309
        %1311 = vrot.lane.b32.xlu0 %v1231, 24
        %v1312 = vpop.permute.xlu0 %1311
        %1313 = vrot.lane.b32.xlu0 %v1232, 24
        %v1314 = vpop.permute.xlu0 %1313
        %1315 = vrot.lane.b32.xlu0 %v1233, 24
        %v1316 = vpop.permute.xlu0 %1315
        %1317 = vrot.lane.b32.xlu0 %v1234, 24
        %v1318 = vpop.permute.xlu0 %1317
        %1319 = vrot.lane.b32.xlu0 %v1235, 24
        %v1320 = vpop.permute.xlu0 %1319
        %1321 = vrot.lane.b32.xlu0 %v1236, 24
        %v1322 = vpop.permute.xlu0 %1321
        %1323 = vrot.lane.b32.xlu0 %v1237, 24
        %v1324 = vpop.permute.xlu0 %1323
        %1325 = vrot.lane.b32.xlu0 %v1238, 24
        %v1326 = vpop.permute.xlu0 %1325
        %1327 = vrot.lane.b32.xlu0 %v1239, 24
        %v1328 = vpop.permute.xlu0 %1327
        %1329 = vrot.lane.b32.xlu0 %v1240, 24
        %v1330 = vpop.permute.xlu0 %1329
        %1331 = vrot.lane.b32.xlu0 %v1241, 24
        %v1332 = vpop.permute.xlu0 %1331
        %1333 = vrot.lane.b32.xlu0 %v1242, 24
        %v1334 = vpop.permute.xlu0 %1333
        %1335 = vrot.lane.b32.xlu0 %v1243, 24
        %v1336 = vpop.permute.xlu0 %1335
        %1337 = vrot.lane.b32.xlu0 %v1244, 24
        %v1338 = vpop.permute.xlu0 %1337
        %1339 = vrot.lane.b32.xlu0 %v1245, 24
        %v1340 = vpop.permute.xlu0 %1339
        %1341 = vrot.lane.b32.xlu0 %v1246, 24
        %v1342 = vpop.permute.xlu0 %1341
        %vm1375 = vcmask 228544
        %1376 = vst.msk [vmem:[#allocation2] sm:$0xff] %vm1375, %v1280
        %1377 = vst.msk [vmem:[#allocation2 + $0x8] sm:$0xff] %vm1375, %v1282
        %1378 = vst.msk [vmem:[#allocation2 + $0x10] sm:$0xff] %vm1375, %v1284
        %1379 = vst.msk [vmem:[#allocation2 + $0x18] sm:$0xff] %vm1375, %v1286
        %1380 = vst.msk [vmem:[#allocation2 + $0x20] sm:$0xff] %vm1375, %v1288
        %1381 = vst.msk [vmem:[#allocation2 + $0x28] sm:$0xff] %vm1375, %v1290
        %1382 = vst.msk [vmem:[#allocation2 + $0x30] sm:$0xff] %vm1375, %v1292
        %1383 = vst.msk [vmem:[#allocation2 + $0x38] sm:$0xff] %vm1375, %v1294
        %1384 = vst.msk [vmem:[#allocation2 + $0x40] sm:$0xff] %vm1375, %v1296
        %1385 = vst.msk [vmem:[#allocation2 + $0x48] sm:$0xff] %vm1375, %v1298
        %1386 = vst.msk [vmem:[#allocation2 + $0x50] sm:$0xff] %vm1375, %v1300
        %1387 = vst.msk [vmem:[#allocation2 + $0x58] sm:$0xff] %vm1375, %v1302
        %1388 = vst.msk [vmem:[#allocation2 + $0x60] sm:$0xff] %vm1375, %v1304
        %1389 = vst.msk [vmem:[#allocation2 + $0x68] sm:$0xff] %vm1375, %v1306
        %1390 = vst.msk [vmem:[#allocation2 + $0x70] sm:$0xff] %vm1375, %v1308
        %1391 = vst.msk [vmem:[#allocation2 + $0x78] sm:$0xff] %vm1375, %v1310
        %1392 = vst.msk [vmem:[#allocation2 + $0x80] sm:$0xff] %vm1375, %v1312
        %1393 = vst.msk [vmem:[#allocation2 + $0x88] sm:$0xff] %vm1375, %v1314
        %1394 = vst.msk [vmem:[#allocation2 + $0x90] sm:$0xff] %vm1375, %v1316
        %1395 = vst.msk [vmem:[#allocation2 + $0x98] sm:$0xff] %vm1375, %v1318
        %1396 = vst.msk [vmem:[#allocation2 + $0xa0] sm:$0xff] %vm1375, %v1320
        %1397 = vst.msk [vmem:[#allocation2 + $0xa8] sm:$0xff] %vm1375, %v1322
        %1398 = vst.msk [vmem:[#allocation2 + $0xb0] sm:$0xff] %vm1375, %v1324
        %1399 = vst.msk [vmem:[#allocation2 + $0xb8] sm:$0xff] %vm1375, %v1326
        %1400 = vst.msk [vmem:[#allocation2 + $0xc0] sm:$0xff] %vm1375, %v1328
        %1401 = vst.msk [vmem:[#allocation2 + $0xc8] sm:$0xff] %vm1375, %v1330
        %1402 = vst.msk [vmem:[#allocation2 + $0xd0] sm:$0xff] %vm1375, %v1332
        %1403 = vst.msk [vmem:[#allocation2 + $0xd8] sm:$0xff] %vm1375, %v1334
        %1404 = vst.msk [vmem:[#allocation2 + $0xe0] sm:$0xff] %vm1375, %v1336
        %1405 = vst.msk [vmem:[#allocation2 + $0xe8] sm:$0xff] %vm1375, %v1338
        %1406 = vst.msk [vmem:[#allocation2 + $0xf0] sm:$0xff] %vm1375, %v1340
        %1407 = vst.msk [vmem:[#allocation2 + $0xf8] sm:$0xff] %vm1375, %v1342
        %v1408 = vld [vmem:[%s1214 + $0x1] sm:$0xff]
        %v1409 = vld [vmem:[%s1214 + $0x9] sm:$0xff]
        %v1410 = vld [vmem:[%s1214 + $0x19] sm:$0xff]
        %v1411 = vld [vmem:[%s1214 + $0x21] sm:$0xff]
        %v1412 = vld [vmem:[%s1214 + $0x31] sm:$0xff]
        %v1413 = vld [vmem:[%s1214 + $0x39] sm:$0xff]
        %v1414 = vld [vmem:[%s1214 + $0x49] sm:$0xff]
        %v1415 = vld [vmem:[%s1214 + $0x51] sm:$0xff]
        %v1416 = vld [vmem:[%s1214 + $0x61] sm:$0xff]
        %v1417 = vld [vmem:[%s1214 + $0x69] sm:$0xff]
        %v1418 = vld [vmem:[%s1214 + $0x79] sm:$0xff]
        %v1419 = vld [vmem:[%s1214 + $0x81] sm:$0xff]
        %v1420 = vld [vmem:[%s1214 + $0x91] sm:$0xff]
        %v1421 = vld [vmem:[%s1214 + $0x99] sm:$0xff]
        %v1422 = vld [vmem:[%s1214 + $0xa9] sm:$0xff]
        %v1423 = vld [vmem:[%s1214 + $0xb1] sm:$0xff]
        %v1424 = vld [vmem:[%s1214 + $0xc1] sm:$0xff]
        %v1425 = vld [vmem:[%s1214 + $0xc9] sm:$0xff]
        %v1426 = vld [vmem:[%s1214 + $0xd9] sm:$0xff]
        %v1427 = vld [vmem:[%s1214 + $0xe1] sm:$0xff]
        %v1428 = vld [vmem:[%s1214 + $0xf1] sm:$0xff]
        %v1429 = vld [vmem:[%s1214 + $0xf9] sm:$0xff]
        %v1430 = vld [vmem:[%s1214 + $0x109] sm:$0xff]
        %v1431 = vld [vmem:[%s1214 + $0x111] sm:$0xff]
        %v1432 = vld [vmem:[%s1214 + $0x121] sm:$0xff]
        %v1433 = vld [vmem:[%s1214 + $0x129] sm:$0xff]
        %v1434 = vld [vmem:[%s1214 + $0x139] sm:$0xff]
        %v1435 = vld [vmem:[%s1214 + $0x141] sm:$0xff]
        %v1436 = vld [vmem:[%s1214 + $0x151] sm:$0xff]
        %v1437 = vld [vmem:[%s1214 + $0x159] sm:$0xff]
        %v1438 = vld [vmem:[%s1214 + $0x169] sm:$0xff]
        %v1439 = vld [vmem:[%s1214 + $0x171] sm:$0xff]
        %1472 = vrot.lane.b32.xlu0 %v1408, 28
        %v1473 = vpop.permute.xlu0 %1472
        %1474 = vrot.lane.b32.xlu0 %v1409, 28
        %v1475 = vpop.permute.xlu0 %1474
        %1476 = vrot.lane.b32.xlu0 %v1410, 28
        %v1477 = vpop.permute.xlu0 %1476
        %1478 = vrot.lane.b32.xlu0 %v1411, 28
        %v1479 = vpop.permute.xlu0 %1478
        %1480 = vrot.lane.b32.xlu0 %v1412, 28
        %v1481 = vpop.permute.xlu0 %1480
        %1482 = vrot.lane.b32.xlu0 %v1413, 28
        %v1483 = vpop.permute.xlu0 %1482
        %1484 = vrot.lane.b32.xlu0 %v1414, 28
        %v1485 = vpop.permute.xlu0 %1484
        %1486 = vrot.lane.b32.xlu0 %v1415, 28
        %v1487 = vpop.permute.xlu0 %1486
        %1488 = vrot.lane.b32.xlu0 %v1416, 28
        %v1489 = vpop.permute.xlu0 %1488
        %1490 = vrot.lane.b32.xlu0 %v1417, 28
        %v1491 = vpop.permute.xlu0 %1490
        %1492 = vrot.lane.b32.xlu0 %v1418, 28
        %v1493 = vpop.permute.xlu0 %1492
        %1494 = vrot.lane.b32.xlu0 %v1419, 28
        %v1495 = vpop.permute.xlu0 %1494
        %1496 = vrot.lane.b32.xlu0 %v1420, 28
        %v1497 = vpop.permute.xlu0 %1496
        %1498 = vrot.lane.b32.xlu0 %v1421, 28
        %v1499 = vpop.permute.xlu0 %1498
        %1500 = vrot.lane.b32.xlu0 %v1422, 28
        %v1501 = vpop.permute.xlu0 %1500
        %1502 = vrot.lane.b32.xlu0 %v1423, 28
        %v1503 = vpop.permute.xlu0 %1502
        %1504 = vrot.lane.b32.xlu0 %v1424, 28
        %v1505 = vpop.permute.xlu0 %1504
        %1506 = vrot.lane.b32.xlu0 %v1425, 28
        %v1507 = vpop.permute.xlu0 %1506
        %1508 = vrot.lane.b32.xlu0 %v1426, 28
        %v1509 = vpop.permute.xlu0 %1508
        %1510 = vrot.lane.b32.xlu0 %v1427, 28
        %v1511 = vpop.permute.xlu0 %1510
        %1512 = vrot.lane.b32.xlu0 %v1428, 28
        %v1513 = vpop.permute.xlu0 %1512
        %1514 = vrot.lane.b32.xlu0 %v1429, 28
        %v1515 = vpop.permute.xlu0 %1514
        %1516 = vrot.lane.b32.xlu0 %v1430, 28
        %v1517 = vpop.permute.xlu0 %1516
        %1518 = vrot.lane.b32.xlu0 %v1431, 28
        %v1519 = vpop.permute.xlu0 %1518
        %1520 = vrot.lane.b32.xlu0 %v1432, 28
        %v1521 = vpop.permute.xlu0 %1520
        %1522 = vrot.lane.b32.xlu0 %v1433, 28
        %v1523 = vpop.permute.xlu0 %1522
        %1524 = vrot.lane.b32.xlu0 %v1434, 28
        %v1525 = vpop.permute.xlu0 %1524
        %1526 = vrot.lane.b32.xlu0 %v1435, 28
        %v1527 = vpop.permute.xlu0 %1526
        %1528 = vrot.lane.b32.xlu0 %v1436, 28
        %v1529 = vpop.permute.xlu0 %1528
        %1530 = vrot.lane.b32.xlu0 %v1437, 28
        %v1531 = vpop.permute.xlu0 %1530
        %1532 = vrot.lane.b32.xlu0 %v1438, 28
        %v1533 = vpop.permute.xlu0 %1532
        %1534 = vrot.lane.b32.xlu0 %v1439, 28
        %v1535 = vpop.permute.xlu0 %1534
        %vm1568 = vcmask 261344
        %1569 = vst.msk [vmem:[#allocation2] sm:$0xff] %vm1568, %v1473
        %1570 = vst.msk [vmem:[#allocation2 + $0x8] sm:$0xff] %vm1568, %v1475
        %1571 = vst.msk [vmem:[#allocation2 + $0x10] sm:$0xff] %vm1568, %v1477
        %1572 = vst.msk [vmem:[#allocation2 + $0x18] sm:$0xff] %vm1568, %v1479
        %1573 = vst.msk [vmem:[#allocation2 + $0x20] sm:$0xff] %vm1568, %v1481
        %1574 = vst.msk [vmem:[#allocation2 + $0x28] sm:$0xff] %vm1568, %v1483
        %1575 = vst.msk [vmem:[#allocation2 + $0x30] sm:$0xff] %vm1568, %v1485
        %1576 = vst.msk [vmem:[#allocation2 + $0x38] sm:$0xff] %vm1568, %v1487
        %1577 = vst.msk [vmem:[#allocation2 + $0x40] sm:$0xff] %vm1568, %v1489
        %1578 = vst.msk [vmem:[#allocation2 + $0x48] sm:$0xff] %vm1568, %v1491
        %1579 = vst.msk [vmem:[#allocation2 + $0x50] sm:$0xff] %vm1568, %v1493
        %1580 = vst.msk [vmem:[#allocation2 + $0x58] sm:$0xff] %vm1568, %v1495
        %1581 = vst.msk [vmem:[#allocation2 + $0x60] sm:$0xff] %vm1568, %v1497
        %1582 = vst.msk [vmem:[#allocation2 + $0x68] sm:$0xff] %vm1568, %v1499
        %1583 = vst.msk [vmem:[#allocation2 + $0x70] sm:$0xff] %vm1568, %v1501
        %1584 = vst.msk [vmem:[#allocation2 + $0x78] sm:$0xff] %vm1568, %v1503
        %1585 = vst.msk [vmem:[#allocation2 + $0x80] sm:$0xff] %vm1568, %v1505
        %1586 = vst.msk [vmem:[#allocation2 + $0x88] sm:$0xff] %vm1568, %v1507
        %1587 = vst.msk [vmem:[#allocation2 + $0x90] sm:$0xff] %vm1568, %v1509
        %1588 = vst.msk [vmem:[#allocation2 + $0x98] sm:$0xff] %vm1568, %v1511
        %1589 = vst.msk [vmem:[#allocation2 + $0xa0] sm:$0xff] %vm1568, %v1513
        %1590 = vst.msk [vmem:[#allocation2 + $0xa8] sm:$0xff] %vm1568, %v1515
        %1591 = vst.msk [vmem:[#allocation2 + $0xb0] sm:$0xff] %vm1568, %v1517
        %1592 = vst.msk [vmem:[#allocation2 + $0xb8] sm:$0xff] %vm1568, %v1519
        %1593 = vst.msk [vmem:[#allocation2 + $0xc0] sm:$0xff] %vm1568, %v1521
        %1594 = vst.msk [vmem:[#allocation2 + $0xc8] sm:$0xff] %vm1568, %v1523
        %1595 = vst.msk [vmem:[#allocation2 + $0xd0] sm:$0xff] %vm1568, %v1525
        %1596 = vst.msk [vmem:[#allocation2 + $0xd8] sm:$0xff] %vm1568, %v1527
        %1597 = vst.msk [vmem:[#allocation2 + $0xe0] sm:$0xff] %vm1568, %v1529
        %1598 = vst.msk [vmem:[#allocation2 + $0xe8] sm:$0xff] %vm1568, %v1531
        %1599 = vst.msk [vmem:[#allocation2 + $0xf0] sm:$0xff] %vm1568, %v1533
        %1600 = vst.msk [vmem:[#allocation2 + $0xf8] sm:$0xff] %vm1568, %v1535
        %v1601 = vld [vmem:[%s1214 + $0x2] sm:$0xff]
        %v1602 = vld [vmem:[%s1214 + $0xa] sm:$0xff]
        %v1603 = vld [vmem:[%s1214 + $0x1a] sm:$0xff]
        %v1604 = vld [vmem:[%s1214 + $0x22] sm:$0xff]
        %v1605 = vld [vmem:[%s1214 + $0x32] sm:$0xff]
        %v1606 = vld [vmem:[%s1214 + $0x3a] sm:$0xff]
        %v1607 = vld [vmem:[%s1214 + $0x4a] sm:$0xff]
        %v1608 = vld [vmem:[%s1214 + $0x52] sm:$0xff]
        %v1609 = vld [vmem:[%s1214 + $0x62] sm:$0xff]
        %v1610 = vld [vmem:[%s1214 + $0x6a] sm:$0xff]
        %v1611 = vld [vmem:[%s1214 + $0x7a] sm:$0xff]
        %v1612 = vld [vmem:[%s1214 + $0x82] sm:$0xff]
        %v1613 = vld [vmem:[%s1214 + $0x92] sm:$0xff]
        %v1614 = vld [vmem:[%s1214 + $0x9a] sm:$0xff]
        %v1615 = vld [vmem:[%s1214 + $0xaa] sm:$0xff]
        %v1616 = vld [vmem:[%s1214 + $0xb2] sm:$0xff]
        %v1617 = vld [vmem:[%s1214 + $0xc2] sm:$0xff]
        %v1618 = vld [vmem:[%s1214 + $0xca] sm:$0xff]
        %v1619 = vld [vmem:[%s1214 + $0xda] sm:$0xff]
        %v1620 = vld [vmem:[%s1214 + $0xe2] sm:$0xff]
        %v1621 = vld [vmem:[%s1214 + $0xf2] sm:$0xff]
        %v1622 = vld [vmem:[%s1214 + $0xfa] sm:$0xff]
        %v1623 = vld [vmem:[%s1214 + $0x10a] sm:$0xff]
        %v1624 = vld [vmem:[%s1214 + $0x112] sm:$0xff]
        %v1625 = vld [vmem:[%s1214 + $0x122] sm:$0xff]
        %v1626 = vld [vmem:[%s1214 + $0x12a] sm:$0xff]
        %v1627 = vld [vmem:[%s1214 + $0x13a] sm:$0xff]
        %v1628 = vld [vmem:[%s1214 + $0x142] sm:$0xff]
        %v1629 = vld [vmem:[%s1214 + $0x152] sm:$0xff]
        %v1630 = vld [vmem:[%s1214 + $0x15a] sm:$0xff]
        %v1631 = vld [vmem:[%s1214 + $0x16a] sm:$0xff]
        %v1632 = vld [vmem:[%s1214 + $0x172] sm:$0xff]
        %1665 = vrot.lane.b32.xlu0 %v1601, 32
        %v1666 = vpop.permute.xlu0 %1665
        %1667 = vrot.lane.b32.xlu0 %v1602, 32
        %v1668 = vpop.permute.xlu0 %1667
        %1669 = vrot.lane.b32.xlu0 %v1603, 32
        %v1670 = vpop.permute.xlu0 %1669
        %1671 = vrot.lane.b32.xlu0 %v1604, 32
        %v1672 = vpop.permute.xlu0 %1671
        %1673 = vrot.lane.b32.xlu0 %v1605, 32
        %v1674 = vpop.permute.xlu0 %1673
        %1675 = vrot.lane.b32.xlu0 %v1606, 32
        %v1676 = vpop.permute.xlu0 %1675
        %1677 = vrot.lane.b32.xlu0 %v1607, 32
        %v1678 = vpop.permute.xlu0 %1677
        %1679 = vrot.lane.b32.xlu0 %v1608, 32
        %v1680 = vpop.permute.xlu0 %1679
        %1681 = vrot.lane.b32.xlu0 %v1609, 32
        %v1682 = vpop.permute.xlu0 %1681
        %1683 = vrot.lane.b32.xlu0 %v1610, 32
        %v1684 = vpop.permute.xlu0 %1683
        %1685 = vrot.lane.b32.xlu0 %v1611, 32
        %v1686 = vpop.permute.xlu0 %1685
        %1687 = vrot.lane.b32.xlu0 %v1612, 32
        %v1688 = vpop.permute.xlu0 %1687
        %1689 = vrot.lane.b32.xlu0 %v1613, 32
        %v1690 = vpop.permute.xlu0 %1689
        %1691 = vrot.lane.b32.xlu0 %v1614, 32
        %v1692 = vpop.permute.xlu0 %1691
        %1693 = vrot.lane.b32.xlu0 %v1615, 32
        %v1694 = vpop.permute.xlu0 %1693
        %1695 = vrot.lane.b32.xlu0 %v1616, 32
        %v1696 = vpop.permute.xlu0 %1695
        %1697 = vrot.lane.b32.xlu0 %v1617, 32
        %v1698 = vpop.permute.xlu0 %1697
        %1699 = vrot.lane.b32.xlu0 %v1618, 32
        %v1700 = vpop.permute.xlu0 %1699
        %1701 = vrot.lane.b32.xlu0 %v1619, 32
        %v1702 = vpop.permute.xlu0 %1701
        %1703 = vrot.lane.b32.xlu0 %v1620, 32
        %v1704 = vpop.permute.xlu0 %1703
        %1705 = vrot.lane.b32.xlu0 %v1621, 32
        %v1706 = vpop.permute.xlu0 %1705
        %1707 = vrot.lane.b32.xlu0 %v1622, 32
        %v1708 = vpop.permute.xlu0 %1707
        %1709 = vrot.lane.b32.xlu0 %v1623, 32
        %v1710 = vpop.permute.xlu0 %1709
        %1711 = vrot.lane.b32.xlu0 %v1624, 32
        %v1712 = vpop.permute.xlu0 %1711
        %1713 = vrot.lane.b32.xlu0 %v1625, 32
        %v1714 = vpop.permute.xlu0 %1713
        %1715 = vrot.lane.b32.xlu0 %v1626, 32
        %v1716 = vpop.permute.xlu0 %1715
        %1717 = vrot.lane.b32.xlu0 %v1627, 32
        %v1718 = vpop.permute.xlu0 %1717
        %1719 = vrot.lane.b32.xlu0 %v1628, 32
        %v1720 = vpop.permute.xlu0 %1719
        %1721 = vrot.lane.b32.xlu0 %v1629, 32
        %v1722 = vpop.permute.xlu0 %1721
        %1723 = vrot.lane.b32.xlu0 %v1630, 32
        %v1724 = vpop.permute.xlu0 %1723
        %1725 = vrot.lane.b32.xlu0 %v1631, 32
        %v1726 = vpop.permute.xlu0 %1725
        %1727 = vrot.lane.b32.xlu0 %v1632, 32
        %v1728 = vpop.permute.xlu0 %1727
        %vm1761 = vcmask 294144
        %1762 = vst.msk [vmem:[#allocation2] sm:$0xff] %vm1761, %v1666
        %1763 = vst.msk [vmem:[#allocation2 + $0x8] sm:$0xff] %vm1761, %v1668
        %1764 = vst.msk [vmem:[#allocation2 + $0x10] sm:$0xff] %vm1761, %v1670
        %1765 = vst.msk [vmem:[#allocation2 + $0x18] sm:$0xff] %vm1761, %v1672
        %1766 = vst.msk [vmem:[#allocation2 + $0x20] sm:$0xff] %vm1761, %v1674
        %1767 = vst.msk [vmem:[#allocation2 + $0x28] sm:$0xff] %vm1761, %v1676
        %1768 = vst.msk [vmem:[#allocation2 + $0x30] sm:$0xff] %vm1761, %v1678
        %1769 = vst.msk [vmem:[#allocation2 + $0x38] sm:$0xff] %vm1761, %v1680
        %1770 = vst.msk [vmem:[#allocation2 + $0x40] sm:$0xff] %vm1761, %v1682
        %1771 = vst.msk [vmem:[#allocation2 + $0x48] sm:$0xff] %vm1761, %v1684
        %1772 = vst.msk [vmem:[#allocation2 + $0x50] sm:$0xff] %vm1761, %v1686
        %1773 = vst.msk [vmem:[#allocation2 + $0x58] sm:$0xff] %vm1761, %v1688
        %1774 = vst.msk [vmem:[#allocation2 + $0x60] sm:$0xff] %vm1761, %v1690
        %1775 = vst.msk [vmem:[#allocation2 + $0x68] sm:$0xff] %vm1761, %v1692
        %1776 = vst.msk [vmem:[#allocation2 + $0x70] sm:$0xff] %vm1761, %v1694
        %1777 = vst.msk [vmem:[#allocation2 + $0x78] sm:$0xff] %vm1761, %v1696
        %1778 = vst.msk [vmem:[#allocation2 + $0x80] sm:$0xff] %vm1761, %v1698
        %1779 = vst.msk [vmem:[#allocation2 + $0x88] sm:$0xff] %vm1761, %v1700
        %1780 = vst.msk [vmem:[#allocation2 + $0x90] sm:$0xff] %vm1761, %v1702
        %1781 = vst.msk [vmem:[#allocation2 + $0x98] sm:$0xff] %vm1761, %v1704
        %1782 = vst.msk [vmem:[#allocation2 + $0xa0] sm:$0xff] %vm1761, %v1706
        %1783 = vst.msk [vmem:[#allocation2 + $0xa8] sm:$0xff] %vm1761, %v1708
        %1784 = vst.msk [vmem:[#allocation2 + $0xb0] sm:$0xff] %vm1761, %v1710
        %1785 = vst.msk [vmem:[#allocation2 + $0xb8] sm:$0xff] %vm1761, %v1712
        %1786 = vst.msk [vmem:[#allocation2 + $0xc0] sm:$0xff] %vm1761, %v1714
        %1787 = vst.msk [vmem:[#allocation2 + $0xc8] sm:$0xff] %vm1761, %v1716
        %1788 = vst.msk [vmem:[#allocation2 + $0xd0] sm:$0xff] %vm1761, %v1718
        %1789 = vst.msk [vmem:[#allocation2 + $0xd8] sm:$0xff] %vm1761, %v1720
        %1790 = vst.msk [vmem:[#allocation2 + $0xe0] sm:$0xff] %vm1761, %v1722
        %1791 = vst.msk [vmem:[#allocation2 + $0xe8] sm:$0xff] %vm1761, %v1724
        %1792 = vst.msk [vmem:[#allocation2 + $0xf0] sm:$0xff] %vm1761, %v1726
        %1793 = vst.msk [vmem:[#allocation2 + $0xf8] sm:$0xff] %vm1761, %v1728
        %v1794 = vld [vmem:[#allocation2] sm:$0xff]
        %v1795 = vld [vmem:[#allocation2 + $0x8] sm:$0xff]
        %v1796 = vld [vmem:[#allocation2 + $0x10] sm:$0xff]
        %v1797 = vld [vmem:[#allocation2 + $0x18] sm:$0xff]
        %v1798 = vld [vmem:[#allocation2 + $0x20] sm:$0xff]
        %v1799 = vld [vmem:[#allocation2 + $0x28] sm:$0xff]
        %v1800 = vld [vmem:[#allocation2 + $0x30] sm:$0xff]
        %v1801 = vld [vmem:[#allocation2 + $0x38] sm:$0xff]
        %v1802 = vld [vmem:[#allocation2 + $0x40] sm:$0xff]
        %v1803 = vld [vmem:[#allocation2 + $0x48] sm:$0xff]
        %v1804 = vld [vmem:[#allocation2 + $0x50] sm:$0xff]
        %v1805 = vld [vmem:[#allocation2 + $0x58] sm:$0xff]
        %v1806 = vld [vmem:[#allocation2 + $0x60] sm:$0xff]
        %v1807 = vld [vmem:[#allocation2 + $0x68] sm:$0xff]
        %v1808 = vld [vmem:[#allocation2 + $0x70] sm:$0xff]
        %v1809 = vld [vmem:[#allocation2 + $0x78] sm:$0xff]
        %v1810 = vld [vmem:[#allocation2 + $0x80] sm:$0xff]
        %v1811 = vld [vmem:[#allocation2 + $0x88] sm:$0xff]
        %v1812 = vld [vmem:[#allocation2 + $0x90] sm:$0xff]
        %v1813 = vld [vmem:[#allocation2 + $0x98] sm:$0xff]
        %v1814 = vld [vmem:[#allocation2 + $0xa0] sm:$0xff]
        %v1815 = vld [vmem:[#allocation2 + $0xa8] sm:$0xff]
        %v1816 = vld [vmem:[#allocation2 + $0xb0] sm:$0xff]
        %v1817 = vld [vmem:[#allocation2 + $0xb8] sm:$0xff]
        %v1818 = vld [vmem:[#allocation2 + $0xc0] sm:$0xff]
        %v1819 = vld [vmem:[#allocation2 + $0xc8] sm:$0xff]
        %v1820 = vld [vmem:[#allocation2 + $0xd0] sm:$0xff]
        %v1821 = vld [vmem:[#allocation2 + $0xd8] sm:$0xff]
        %v1822 = vld [vmem:[#allocation2 + $0xe0] sm:$0xff]
        %v1823 = vld [vmem:[#allocation2 + $0xe8] sm:$0xff]
        %v1824 = vld [vmem:[#allocation2 + $0xf0] sm:$0xff]
        %v1825 = vld [vmem:[#allocation2 + $0xf8] sm:$0xff]
        %v1826 = vpack.c.bf16 %v1795, %v1794
        %v1827 = vpack.c.bf16 %v1797, %v1796
        %v1828 = vpack.c.bf16 %v1799, %v1798
        %v1829 = vpack.c.bf16 %v1801, %v1800
        %v1830 = vpack.c.bf16 %v1803, %v1802
        %v1831 = vpack.c.bf16 %v1805, %v1804
        %v1832 = vpack.c.bf16 %v1807, %v1806
        %v1833 = vpack.c.bf16 %v1809, %v1808
        %v1834 = vpack.c.bf16 %v1811, %v1810
        %v1835 = vpack.c.bf16 %v1813, %v1812
        %v1836 = vpack.c.bf16 %v1815, %v1814
        %v1837 = vpack.c.bf16 %v1817, %v1816
        %v1838 = vpack.c.bf16 %v1819, %v1818
        %v1839 = vpack.c.bf16 %v1821, %v1820
        %v1840 = vpack.c.bf16 %v1823, %v1822
        %v1841 = vpack.c.bf16 %v1825, %v1824
        %v1842 = vld [vmem:[%s1] sm:$0xf]
        %v1843 = vld [vmem:[%s1 + $0x4] sm:$0xf]
        %v1844 = vld [vmem:[%s1 + $0x8] sm:$0xf]
        %v1845 = vld [vmem:[%s1 + $0xc] sm:$0xf]
        %v1846 = vld [vmem:[%s1 + $0x10] sm:$0x3]
        %v1852 = vunpack.c.l.b16 %v1842
        %v1853 = vunpack.c.l.b16 %v1843
        %v1854 = vunpack.c.l.b16 %v1844
        %v1855 = vunpack.c.l.b16 %v1845
        %v1856 = vunpack.c.l.b16 %v1846
        %v1857 = vpack.c.b16 %v1853, %v1852
        %v1858 = vpack.c.b16 %v1855, %v1854
        %v1859 = vpack.c.b16 %v1856, %v1856
        %vm1862 = vcmask 293888
        %v1864 = vsel %vm1862, %v1826, 0
        %v1867 = vsel %vm1862, %v1827, 0
        %v1870 = vsel %vm1862, %v1828, 0
        %v1873 = vsel %vm1862, %v1829, 0
        %v1876 = vsel %vm1862, %v1830, 0
        %v1879 = vsel %vm1862, %v1831, 0
        %v1882 = vsel %vm1862, %v1832, 0
        %v1885 = vsel %vm1862, %v1833, 0
        %v1888 = vsel %vm1862, %v1834, 0
        %v1891 = vsel %vm1862, %v1835, 0
        %v1894 = vsel %vm1862, %v1836, 0
        %v1897 = vsel %vm1862, %v1837, 0
        %v1900 = vsel %vm1862, %v1838, 0
        %v1903 = vsel %vm1862, %v1839, 0
        %v1906 = vsel %vm1862, %v1840, 0
        %v1909 = vsel %vm1862, %v1841, 0
        %vm1911 = vcmask 1041408
        %v1913 = vsel %vm1911, %v1859, 0
        %1915 = vmatprep.subr.bf16.mxu0 0
        %1916 = vmatpush1.bf16.msra.mxu0 0
        %1917 = vmatprep.subr.bf16.mxu0 0
        %1918 = vmatpush1.bf16.msra.mxu0 0
        %1919 = vmatprep.subr.bf16.mxu0 0
        %1920 = vmatpush1.bf16.msra.mxu0 0
        %1921 = vmatprep.subr.bf16.mxu0 0
        %1922 = vmatpush1.bf16.msra.mxu0 0
        %1923 = vmatprep.subr.bf16.mxu0 0
        %1924 = vmatpush1.bf16.msra.mxu0 0
        %1925 = vmatprep.subr.bf16.mxu0 0
        %1926 = vmatpush1.bf16.msra.mxu0 %v1913
        %1927 = vmatprep.subr.bf16.mxu0 0
        %1928 = vmatpush1.bf16.msra.mxu0 %v1858
        %1929 = vmatprep.subr.bf16.mxu0 0
        %1930 = vmatpush1.bf16.msra.mxu0 %v1857
        %1931 = vmatprep.subr.bf16.mxu0 0
        %1932 = vmatpush2.bf16.msra.mxu0 0
        %1933 = vmatprep.subr.bf16.mxu0 0
        %1934 = vmatpush2.bf16.msra.mxu0 0
        %1935 = vmatprep.subr.bf16.mxu0 0
        %1936 = vmatpush2.bf16.msra.mxu0 0
        %1937 = vmatprep.subr.bf16.mxu0 0
        %1938 = vmatpush2.bf16.msra.mxu0 0
        %1939 = vmatprep.subr.bf16.mxu0 0
        %1940 = vmatpush2.bf16.msra.mxu0 0
        %1941 = vmatprep.subr.bf16.mxu0 0
        %1942 = vmatpush2.bf16.msra.mxu0 0
        %1943 = vmatprep.subr.bf16.mxu0 0
        %1944 = vmatpush2.bf16.msra.mxu0 0
        %1945 = vmatprep.subr.bf16.mxu0 0
        %1946 = vmatpush2.bf16.msra.mxu0 0
        %1947 = vmatprep.mubr.bf16.mxu0 0
        %1948 = vmatmul.mubr.bf16.gmra.mxu0 %v1864
        %v1949 = vpop.f32.mrf.mxu0
        %v1950 = vadd.f32 0.0, %v1949
        %v1951 = vpop.f32.mrf.mxu0
        %v1952 = vpop.f32.mrf.mxu0
        %v1953 = vadd.f32 0.0, %v1952
        %v1954 = vpop.f32.mrf.mxu0
        %1955 = vmatprep.mubr.bf16.mxu0 0
        %1956 = vmatmul.mubr.bf16.gmra.mxu0 %v1867
        %v1957 = vpop.f32.mrf.mxu0
        %v1958 = vadd.f32 0.0, %v1957
        %v1959 = vpop.f32.mrf.mxu0
        %v1960 = vpop.f32.mrf.mxu0
        %v1961 = vadd.f32 0.0, %v1960
        %v1962 = vpop.f32.mrf.mxu0
        %1963 = vmatprep.mubr.bf16.mxu0 0
        %1964 = vmatmul.mubr.bf16.gmra.mxu0 %v1870
        %v1965 = vpop.f32.mrf.mxu0
        %v1966 = vadd.f32 0.0, %v1965
        %v1967 = vpop.f32.mrf.mxu0
        %v1968 = vpop.f32.mrf.mxu0
        %v1969 = vadd.f32 0.0, %v1968
        %v1970 = vpop.f32.mrf.mxu0
        %1971 = vmatprep.mubr.bf16.mxu0 0
        %1972 = vmatmul.mubr.bf16.gmra.mxu0 %v1873
        %v1973 = vpop.f32.mrf.mxu0
        %v1974 = vadd.f32 0.0, %v1973
        %v1975 = vpop.f32.mrf.mxu0
        %v1976 = vpop.f32.mrf.mxu0
        %v1977 = vadd.f32 0.0, %v1976
        %v1978 = vpop.f32.mrf.mxu0
        %1979 = vmatprep.mubr.bf16.mxu0 0
        %1980 = vmatmul.mubr.bf16.gmra.mxu0 %v1876
        %v1981 = vpop.f32.mrf.mxu0
        %v1982 = vadd.f32 0.0, %v1981
        %v1983 = vpop.f32.mrf.mxu0
        %v1984 = vpop.f32.mrf.mxu0
        %v1985 = vadd.f32 0.0, %v1984
        %v1986 = vpop.f32.mrf.mxu0
        %1987 = vmatprep.mubr.bf16.mxu0 0
        %1988 = vmatmul.mubr.bf16.gmra.mxu0 %v1879
        %v1989 = vpop.f32.mrf.mxu0
        %v1990 = vadd.f32 0.0, %v1989
        %v1991 = vpop.f32.mrf.mxu0
        %v1992 = vpop.f32.mrf.mxu0
        %v1993 = vadd.f32 0.0, %v1992
        %v1994 = vpop.f32.mrf.mxu0
        %1995 = vmatprep.mubr.bf16.mxu0 0
        %1996 = vmatmul.mubr.bf16.gmra.mxu0 %v1882
        %v1997 = vpop.f32.mrf.mxu0
        %v1998 = vadd.f32 0.0, %v1997
        %v1999 = vpop.f32.mrf.mxu0
        %v2000 = vpop.f32.mrf.mxu0
        %v2001 = vadd.f32 0.0, %v2000
        %v2002 = vpop.f32.mrf.mxu0
        %2003 = vmatprep.mubr.bf16.mxu0 0
        %2004 = vmatmul.mubr.bf16.gmra.mxu0 %v1885
        %v2005 = vpop.f32.mrf.mxu0
        %v2006 = vadd.f32 0.0, %v2005
        %v2007 = vpop.f32.mrf.mxu0
        %v2008 = vpop.f32.mrf.mxu0
        %v2009 = vadd.f32 0.0, %v2008
        %v2010 = vpop.f32.mrf.mxu0
        %2011 = vmatprep.mubr.bf16.mxu0 0
        %2012 = vmatmul.mubr.bf16.gmra.mxu0 %v1888
        %v2013 = vpop.f32.mrf.mxu0
        %v2014 = vadd.f32 0.0, %v2013
        %v2015 = vpop.f32.mrf.mxu0
        %v2016 = vpop.f32.mrf.mxu0
        %v2017 = vadd.f32 0.0, %v2016
        %v2018 = vpop.f32.mrf.mxu0
        %2019 = vmatprep.mubr.bf16.mxu0 0
        %2020 = vmatmul.mubr.bf16.gmra.mxu0 %v1891
        %v2021 = vpop.f32.mrf.mxu0
        %v2022 = vadd.f32 0.0, %v2021
        %v2023 = vpop.f32.mrf.mxu0
        %v2024 = vpop.f32.mrf.mxu0
        %v2025 = vadd.f32 0.0, %v2024
        %v2026 = vpop.f32.mrf.mxu0
        %2027 = vmatprep.mubr.bf16.mxu0 0
        %2028 = vmatmul.mubr.bf16.gmra.mxu0 %v1894
        %v2029 = vpop.f32.mrf.mxu0
        %v2030 = vadd.f32 0.0, %v2029
        %v2031 = vpop.f32.mrf.mxu0
        %v2032 = vpop.f32.mrf.mxu0
        %v2033 = vadd.f32 0.0, %v2032
        %v2034 = vpop.f32.mrf.mxu0
        %2035 = vmatprep.mubr.bf16.mxu0 0
        %2036 = vmatmul.mubr.bf16.gmra.mxu0 %v1897
        %v2037 = vpop.f32.mrf.mxu0
        %v2038 = vadd.f32 0.0, %v2037
        %v2039 = vpop.f32.mrf.mxu0
        %v2040 = vpop.f32.mrf.mxu0
        %v2041 = vadd.f32 0.0, %v2040
        %v2042 = vpop.f32.mrf.mxu0
        %2043 = vmatprep.mubr.bf16.mxu0 0
        %2044 = vmatmul.mubr.bf16.gmra.mxu0 %v1900
        %v2045 = vpop.f32.mrf.mxu0
        %v2046 = vadd.f32 0.0, %v2045
        %v2047 = vpop.f32.mrf.mxu0
        %v2048 = vpop.f32.mrf.mxu0
        %v2049 = vadd.f32 0.0, %v2048
        %v2050 = vpop.f32.mrf.mxu0
        %2051 = vmatprep.mubr.bf16.mxu0 0
        %2052 = vmatmul.mubr.bf16.gmra.mxu0 %v1903
        %v2053 = vpop.f32.mrf.mxu0
        %v2054 = vadd.f32 0.0, %v2053
        %v2055 = vpop.f32.mrf.mxu0
        %v2056 = vpop.f32.mrf.mxu0
        %v2057 = vadd.f32 0.0, %v2056
        %v2058 = vpop.f32.mrf.mxu0
        %2059 = vmatprep.mubr.bf16.mxu0 0
        %2060 = vmatmul.mubr.bf16.gmra.mxu0 %v1906
        %v2061 = vpop.f32.mrf.mxu0
        %v2062 = vadd.f32 0.0, %v2061
        %v2063 = vpop.f32.mrf.mxu0
        %v2064 = vpop.f32.mrf.mxu0
        %v2065 = vadd.f32 0.0, %v2064
        %v2066 = vpop.f32.mrf.mxu0
        %2067 = vmatprep.mubr.bf16.mxu0 0
        %2068 = vmatmul.mubr.bf16.gmra.mxu0 %v1909
        %v2069 = vpop.f32.mrf.mxu0
        %v2070 = vadd.f32 0.0, %v2069
        %v2071 = vpop.f32.mrf.mxu0
        %v2072 = vpop.f32.mrf.mxu0
        %v2073 = vadd.f32 0.0, %v2072
        %v2074 = vpop.f32.mrf.mxu0
        %2075 = vdwg.mxu0
        %vm2076 = vcmask 64512
        %2077 = vst.msk [vmem:[%s181] sm:$0xff] %vm2076, %v1950
        %2078 = vst.msk [vmem:[%s181 + $0x8] sm:$0xff] %vm2076, %v1953
        %2079 = vst.msk [vmem:[%s181 + $0x10] sm:$0xff] %vm2076, %v1958
        %2080 = vst.msk [vmem:[%s181 + $0x18] sm:$0xff] %vm2076, %v1961
        %2081 = vst.msk [vmem:[%s181 + $0x20] sm:$0xff] %vm2076, %v1966
        %2082 = vst.msk [vmem:[%s181 + $0x28] sm:$0xff] %vm2076, %v1969
        %2083 = vst.msk [vmem:[%s181 + $0x30] sm:$0xff] %vm2076, %v1974
        %2084 = vst.msk [vmem:[%s181 + $0x38] sm:$0xff] %vm2076, %v1977
        %2085 = vst.msk [vmem:[%s181 + $0x40] sm:$0xff] %vm2076, %v1982
        %2086 = vst.msk [vmem:[%s181 + $0x48] sm:$0xff] %vm2076, %v1985
        %2087 = vst.msk [vmem:[%s181 + $0x50] sm:$0xff] %vm2076, %v1990
        %2088 = vst.msk [vmem:[%s181 + $0x58] sm:$0xff] %vm2076, %v1993
        %2089 = vst.msk [vmem:[%s181 + $0x60] sm:$0xff] %vm2076, %v1998
        %2090 = vst.msk [vmem:[%s181 + $0x68] sm:$0xff] %vm2076, %v2001
        %2091 = vst.msk [vmem:[%s181 + $0x70] sm:$0xff] %vm2076, %v2006
        %2092 = vst.msk [vmem:[%s181 + $0x78] sm:$0xff] %vm2076, %v2009
        %2093 = vst.msk [vmem:[%s181 + $0x80] sm:$0xff] %vm2076, %v2014
        %2094 = vst.msk [vmem:[%s181 + $0x88] sm:$0xff] %vm2076, %v2017
        %2095 = vst.msk [vmem:[%s181 + $0x90] sm:$0xff] %vm2076, %v2022
        %2096 = vst.msk [vmem:[%s181 + $0x98] sm:$0xff] %vm2076, %v2025
        %2097 = vst.msk [vmem:[%s181 + $0xa0] sm:$0xff] %vm2076, %v2030
        %2098 = vst.msk [vmem:[%s181 + $0xa8] sm:$0xff] %vm2076, %v2033
        %2099 = vst.msk [vmem:[%s181 + $0xb0] sm:$0xff] %vm2076, %v2038
        %2100 = vst.msk [vmem:[%s181 + $0xb8] sm:$0xff] %vm2076, %v2041
        %2101 = vst.msk [vmem:[%s181 + $0xc0] sm:$0xff] %vm2076, %v2046
        %2102 = vst.msk [vmem:[%s181 + $0xc8] sm:$0xff] %vm2076, %v2049
        %2103 = vst.msk [vmem:[%s181 + $0xd0] sm:$0xff] %vm2076, %v2054
        %2104 = vst.msk [vmem:[%s181 + $0xd8] sm:$0xff] %vm2076, %v2057
        %2105 = vst.msk [vmem:[%s181 + $0xe0] sm:$0xff] %vm2076, %v2062
        %2106 = vst.msk [vmem:[%s181 + $0xe8] sm:$0xff] %vm2076, %v2065
        %2107 = vst.msk [vmem:[%s181 + $0xf0] sm:$0xff] %vm2076, %v2070
        %2108 = vst.msk [vmem:[%s181 + $0xf8] sm:$0xff] %vm2076, %v2073
        %v2109 = vsel %vm2076, %v1950, 0.0
        %v2110 = vsel %vm2076, %v1953, 0.0
        %v2111 = vadd.f32 %v2109, %v2110
        %v2112 = vsel %vm2076, %v1958, 0.0
        %v2113 = vadd.f32 %v2111, %v2112
        %v2114 = vsel %vm2076, %v1961, 0.0
        %v2115 = vadd.f32 %v2113, %v2114
        %v2116 = vsel %vm2076, %v1966, 0.0
        %v2117 = vadd.f32 %v2115, %v2116
        %v2118 = vsel %vm2076, %v1969, 0.0
        %v2119 = vadd.f32 %v2117, %v2118
        %v2120 = vsel %vm2076, %v1974, 0.0
        %v2121 = vadd.f32 %v2119, %v2120
        %v2122 = vsel %vm2076, %v1977, 0.0
        %v2123 = vadd.f32 %v2121, %v2122
        %v2124 = vsel %vm2076, %v1982, 0.0
        %v2125 = vadd.f32 %v2123, %v2124
        %v2126 = vsel %vm2076, %v1985, 0.0
        %v2127 = vadd.f32 %v2125, %v2126
        %v2128 = vsel %vm2076, %v1990, 0.0
        %v2129 = vadd.f32 %v2127, %v2128
        %v2130 = vsel %vm2076, %v1993, 0.0
        %v2131 = vadd.f32 %v2129, %v2130
        %v2132 = vsel %vm2076, %v1998, 0.0
        %v2133 = vadd.f32 %v2131, %v2132
        %v2134 = vsel %vm2076, %v2001, 0.0
        %v2135 = vadd.f32 %v2133, %v2134
        %v2136 = vsel %vm2076, %v2006, 0.0
        %v2137 = vadd.f32 %v2135, %v2136
        %v2138 = vsel %vm2076, %v2009, 0.0
        %v2139 = vadd.f32 %v2137, %v2138
        %v2140 = vsel %vm2076, %v2014, 0.0
        %v2141 = vadd.f32 %v2139, %v2140
        %v2142 = vsel %vm2076, %v2017, 0.0
        %v2143 = vadd.f32 %v2141, %v2142
        %v2144 = vsel %vm2076, %v2022, 0.0
        %v2145 = vadd.f32 %v2143, %v2144
        %v2146 = vsel %vm2076, %v2025, 0.0
        %v2147 = vadd.f32 %v2145, %v2146
        %v2148 = vsel %vm2076, %v2030, 0.0
        %v2149 = vadd.f32 %v2147, %v2148
        %v2150 = vsel %vm2076, %v2033, 0.0
        %v2151 = vadd.f32 %v2149, %v2150
        %v2152 = vsel %vm2076, %v2038, 0.0
        %v2153 = vadd.f32 %v2151, %v2152
        %v2154 = vsel %vm2076, %v2041, 0.0
        %v2155 = vadd.f32 %v2153, %v2154
        %v2156 = vsel %vm2076, %v2046, 0.0
        %v2157 = vadd.f32 %v2155, %v2156
        %v2158 = vsel %vm2076, %v2049, 0.0
        %v2159 = vadd.f32 %v2157, %v2158
        %v2160 = vsel %vm2076, %v2054, 0.0
        %v2161 = vadd.f32 %v2159, %v2160
        %v2162 = vsel %vm2076, %v2057, 0.0
        %v2163 = vadd.f32 %v2161, %v2162
        %v2164 = vsel %vm2076, %v2062, 0.0
        %v2165 = vadd.f32 %v2163, %v2164
        %v2166 = vsel %vm2076, %v2065, 0.0
        %v2167 = vadd.f32 %v2165, %v2166
        %v2168 = vsel %vm2076, %v2070, 0.0
        %v2169 = vadd.f32 %v2167, %v2168
        %v2170 = vsel %vm2076, %v2073, 0.0
        %v2171 = vadd.f32 %v2169, %v2170
        %v2172 = vrot.slane %v2171, 4
        %v2173 = vadd.f32 %v2171, %v2172
        %v2174 = vrot.slane %v2173, 2
        %v2175 = vadd.f32 %v2173, %v2174
        %v2176 = vrot.slane %v2175, 1
        %v2177 = vadd.f32 %v2175, %v2176
        %vm2178 = vcmask 57344
        %2179 = vst.msk [vmem:[%s171] sm:$0x1] %vm2178, %v2177
        %v2180 = vmul.f32 %v1950, %v1950
        %v2181 = vmul.f32 %v1953, %v1953
        %v2182 = vmul.f32 %v1958, %v1958
        %v2183 = vmul.f32 %v1961, %v1961
        %v2184 = vmul.f32 %v1966, %v1966
        %v2185 = vmul.f32 %v1969, %v1969
        %v2186 = vmul.f32 %v1974, %v1974
        %v2187 = vmul.f32 %v1977, %v1977
        %v2188 = vmul.f32 %v1982, %v1982
        %v2189 = vmul.f32 %v1985, %v1985
        %v2190 = vmul.f32 %v1990, %v1990
        %v2191 = vmul.f32 %v1993, %v1993
        %v2192 = vmul.f32 %v1998, %v1998
        %v2193 = vmul.f32 %v2001, %v2001
        %v2194 = vmul.f32 %v2006, %v2006
        %v2195 = vmul.f32 %v2009, %v2009
        %v2196 = vmul.f32 %v2014, %v2014
        %v2197 = vmul.f32 %v2017, %v2017
        %v2198 = vmul.f32 %v2022, %v2022
        %v2199 = vmul.f32 %v2025, %v2025
        %v2200 = vmul.f32 %v2030, %v2030
        %v2201 = vmul.f32 %v2033, %v2033
        %v2202 = vmul.f32 %v2038, %v2038
        %v2203 = vmul.f32 %v2041, %v2041
        %v2204 = vmul.f32 %v2046, %v2046
        %v2205 = vmul.f32 %v2049, %v2049
        %v2206 = vmul.f32 %v2054, %v2054
        %v2207 = vmul.f32 %v2057, %v2057
        %v2208 = vmul.f32 %v2062, %v2062
        %v2209 = vmul.f32 %v2065, %v2065
        %v2210 = vmul.f32 %v2070, %v2070
        %v2211 = vmul.f32 %v2073, %v2073
        %v2212 = vsel %vm2076, %v2180, 0.0
        %v2213 = vsel %vm2076, %v2181, 0.0
        %v2214 = vadd.f32 %v2212, %v2213
        %v2215 = vsel %vm2076, %v2182, 0.0
        %v2216 = vadd.f32 %v2214, %v2215
        %v2217 = vsel %vm2076, %v2183, 0.0
        %v2218 = vadd.f32 %v2216, %v2217
        %v2219 = vsel %vm2076, %v2184, 0.0
        %v2220 = vadd.f32 %v2218, %v2219
        %v2221 = vsel %vm2076, %v2185, 0.0
        %v2222 = vadd.f32 %v2220, %v2221
        %v2223 = vsel %vm2076, %v2186, 0.0
        %v2224 = vadd.f32 %v2222, %v2223
        %v2225 = vsel %vm2076, %v2187, 0.0
        %v2226 = vadd.f32 %v2224, %v2225
        %v2227 = vsel %vm2076, %v2188, 0.0
        %v2228 = vadd.f32 %v2226, %v2227
        %v2229 = vsel %vm2076, %v2189, 0.0
        %v2230 = vadd.f32 %v2228, %v2229
        %v2231 = vsel %vm2076, %v2190, 0.0
        %v2232 = vadd.f32 %v2230, %v2231
        %v2233 = vsel %vm2076, %v2191, 0.0
        %v2234 = vadd.f32 %v2232, %v2233
        %v2235 = vsel %vm2076, %v2192, 0.0
        %v2236 = vadd.f32 %v2234, %v2235
        %v2237 = vsel %vm2076, %v2193, 0.0
        %v2238 = vadd.f32 %v2236, %v2237
        %v2239 = vsel %vm2076, %v2194, 0.0
        %v2240 = vadd.f32 %v2238, %v2239
        %v2241 = vsel %vm2076, %v2195, 0.0
        %v2242 = vadd.f32 %v2240, %v2241
        %v2243 = vsel %vm2076, %v2196, 0.0
        %v2244 = vadd.f32 %v2242, %v2243
        %v2245 = vsel %vm2076, %v2197, 0.0
        %v2246 = vadd.f32 %v2244, %v2245
        %v2247 = vsel %vm2076, %v2198, 0.0
        %v2248 = vadd.f32 %v2246, %v2247
        %v2249 = vsel %vm2076, %v2199, 0.0
        %v2250 = vadd.f32 %v2248, %v2249
        %v2251 = vsel %vm2076, %v2200, 0.0
        %v2252 = vadd.f32 %v2250, %v2251
        %v2253 = vsel %vm2076, %v2201, 0.0
        %v2254 = vadd.f32 %v2252, %v2253
        %v2255 = vsel %vm2076, %v2202, 0.0
        %v2256 = vadd.f32 %v2254, %v2255
        %v2257 = vsel %vm2076, %v2203, 0.0
        %v2258 = vadd.f32 %v2256, %v2257
        %v2259 = vsel %vm2076, %v2204, 0.0
        %v2260 = vadd.f32 %v2258, %v2259
        %v2261 = vsel %vm2076, %v2205, 0.0
        %v2262 = vadd.f32 %v2260, %v2261
        %v2263 = vsel %vm2076, %v2206, 0.0
        %v2264 = vadd.f32 %v2262, %v2263
        %v2265 = vsel %vm2076, %v2207, 0.0
        %v2266 = vadd.f32 %v2264, %v2265
        %v2267 = vsel %vm2076, %v2208, 0.0
        %v2268 = vadd.f32 %v2266, %v2267
        %v2269 = vsel %vm2076, %v2209, 0.0
        %v2270 = vadd.f32 %v2268, %v2269
        %v2271 = vsel %vm2076, %v2210, 0.0
        %v2272 = vadd.f32 %v2270, %v2271
        %v2273 = vsel %vm2076, %v2211, 0.0
        %v2274 = vadd.f32 %v2272, %v2273
        %v2275 = vrot.slane %v2274, 4
        %v2276 = vadd.f32 %v2274, %v2275
        %v2277 = vrot.slane %v2276, 2
        %v2278 = vadd.f32 %v2276, %v2277
        %v2279 = vrot.slane %v2278, 1
        %v2280 = vadd.f32 %v2278, %v2279
        %2281 = vst.msk [vmem:[%s171 + $0x1] sm:$0x1] %vm2178, %v2280
        %p2282 = scmp.lt.s32.totalorder %s18, 1
        %s2283 = scalar_select %p2282, %s18, 1
        %s2284 = smul.addr %s2283, 32
        %s2285 = smul.addr %s2284, 8
        %s2286 = scalar_lea.vmem %s2, %s2285
        %s2287 = sand.u32 %s99, 1
        %s2288 = scalar_lea.sflag [#allocation4], %s2287
        %s2289 = sand.u32 %s99, 1
        %s2290 = smul.addr %s2289, 2
        %s2291 = scalar_lea.vmem [#allocation3], %s2290
        // Predicated region
        $region29: #{tpu_custom_call.1} parent=27 // pred_check
          %p2292 = pneg %p83
        $region30: #{tpu_custom_call.1} parent=27 // pred_check_branch
          %2294 = sbr.rel (%p2292) target = $region32
        $region31: #{tpu_custom_call.1} parent=27 // pred_region
          _
        $region32: #{tpu_custom_call.1} parent=27 // pred_fallthru
          _
        // Predicated region
        $region33: #{tpu_custom_call.1} parent=27 // pred_check
          %p2295 = pneg %p109
        $region34: #{tpu_custom_call.1} parent=27 // pred_check_branch
          %2297 = sbr.rel (%p2295) target = $region36
        $region35: #{tpu_custom_call.1} parent=27 // pred_region
          %s2299 = ssub.s32 32, 32
          %2300 = vsyncadd %s2288, %s2299
          %s2301 = smul.addr %s18, 32
          %s2302 = scalar_lea.hbm %s3, %s2301
          %s2304 = sshll.u32 %s2291, 4
          %s2305 = int_to_ptr.vmem [resolvable:$true] %s2304
          %2307 = dma.vmem_to_hbm [thread:$0]  %s2305, 32, %s2302, %s2288
        $region36: #{tpu_custom_call.1} parent=27 // pred_fallthru
          _
      $region28: #{tpu_custom_call.1} parent=5 // pred_fallthru
        _
      %p2308 = scmp.le.s32.totalorder 2, %s13
      // Predicated region
      $region37: #{tpu_custom_call.1} parent=5 // pred_check
        %p2309 = pneg %p2308
      $region38: #{tpu_custom_call.1} parent=5 // pred_check_branch
        %2311 = sbr.rel (%p2309) target = $region40
      $region39: #{tpu_custom_call.1} parent=5 // pred_region
        %s2312 = ssub.s32 %s13, 2
        // Predicated region
        $region41: #{tpu_custom_call.1} parent=39 // pred_check
          %p2313 = pneg %p89
        $region42: #{tpu_custom_call.1} parent=39 // pred_check_branch
          %2315 = sbr.rel (%p2313) target = $region44
        $region43: #{tpu_custom_call.1} parent=39 // pred_region
          %p2316 = scmp.lt.s32.totalorder %s19, 1
          %s2317 = scalar_select %p2316, %s19, 1
          %s2318 = smul.addr %s2317, 32
          %s2319 = smul.addr %s2318, 8
          %s2320 = scalar_lea.vmem %s2, %s2319
        $region44: #{tpu_custom_call.1} parent=39 // pred_fallthru
          _
        // Predicated region
        $region45: #{tpu_custom_call.1} parent=39 // pred_check
          %p2321 = pneg %p115
        $region46: #{tpu_custom_call.1} parent=39 // pred_check_branch
          %2323 = sbr.rel (%p2321) target = $region48
        $region47: #{tpu_custom_call.1} parent=39 // pred_region
          %s2324 = sand.u32 %s100, 1
          %s2325 = scalar_lea.sflag [#allocation4], %s2324
          %s2326 = sand.u32 %s100, 1
          %s2327 = smul.addr %s2326, 2
          %s2328 = scalar_lea.vmem [#allocation3], %s2327
          %2329 = dma.done %s2325, 32
        $region48: #{tpu_custom_call.1} parent=39 // pred_fallthru
          _
      $region40: #{tpu_custom_call.1} parent=5 // pred_fallthru
        _
    $region6: #{tpu_custom_call.1} parent=1 // loop_footer
      %s17 = sadd.s32 1, %s13
    $region7: #{tpu_custom_call.1} parent=1 // loop_footer_branch
      %12 = sbr.rel target = $region3
    $region8: #{tpu_custom_call.1} parent=1 // loop_exit
      _
    %2330 = vsyncpa [#allocation4], 1
    %s2331 = scalar_lea.sflag [#allocation4], 1
    %2332 = vsyncpa %s2331, 1

</llo_original>
